<compile_context>
chip_gen: v7x
topology: tpu7x:2x2x1
jax: 0.10.0
libtpu: 0.0.40
codegen_flags: <defaults>
</compile_context>

<pallas_src>
import functools

import jax
import jax.numpy as jnp
from jax.experimental import pallas as pl
from jax.experimental.pallas import tpu as pltpu


# ------------------------------ Pallas kernel ------------------------------ #
def _stack_kernel(data_ref, params_ref, out_ref, *, B, T, F, H1, H2, cols):
    """Fused Stack forward (block_1 -> residual -> block_2 -> sum forecasts).

    data_ref   : [T+F, 2B]  (x0 | x1) channel planes, time on sublanes,
                            batch on lanes; rows >= T are zero padding.
    params_ref : [R, C]     packed transposed weights/biases (see `cols`).
    out_ref    : [T+F, B]   rows < T: final residual, rows >= T: forecast sum.
    """
    TF = T + F
    c = cols

    x0e = data_ref[:, 0:B]            # [TF, B]  channel 0 (zero beyond row T)
    x1e = data_ref[:, B:2 * B]        # [TF, B]  channel 1
    x0 = x0e[:T, :]                   # [T, B]
    x1 = x1e[:T, :]

    def lane_bcast(col_start, rows):
        # Loop-invariant lane-direction broadcast of one weight column.
        # Hoisted: each column is sliced & broadcast exactly once.
        return jnp.broadcast_to(
            params_ref[0:rows, col_start:col_start + 1], (rows, B))

    def run_block(x_cols, H, wih_key, bh_key, whh_key, whead_key, bhead_key):
        n_in = len(x_cols)
        # --- hoisted loop-invariant weight broadcasts (lane direction) ---
        wih_cols = [lane_bcast(c[wih_key] + j, H) for j in range(n_in)]
        bh_b = lane_bcast(c[bh_key], H)
        whh_cols = [lane_bcast(c[whh_key] + k, H) for k in range(H)]
        whead_cols = [lane_bcast(c[whead_key] + k, TF) for k in range(H)]
        bhead_b = lane_bcast(c[bhead_key], TF)

        # --- input projections (h-independent -> off the critical path) ---
        projs = []
        for t in range(T):
            p = bh_b
            for xc, wc in zip(x_cols, wih_cols):
                p = p + wc * xc[t:t + 1, :]        # sublane slice, cheap
            projs.append(p)

        # --- serialized tanh recurrence: per step only H sublane-broadcast
        #     VPU FMAs + one tanh (EUP slot), no cross-lane work ---
        h = jnp.tanh(projs[0])                     # h_{-1}=0 -> w_hh term drops
        for t in range(1, T):
            acc = projs[t]
            for k in range(H):
                acc = acc + whh_cols[k] * h[k:k + 1, :]
            h = jnp.tanh(acc)

        # --- merged backcast|forecast head: [TF, B] ---
        head = bhead_b
        for k in range(H):
            head = head + whead_cols[k] * h[k:k + 1, :]
        return head

    # ------------------------------ block 1 ------------------------------ #
    head1 = run_block([x0, x1], H1, "wih1", "bh1", "whh1", "whead1", "bhead1")
    r1 = x0 - head1[:T, :]                         # residual stays in vregs

    # ------------------------------ block 2 ------------------------------ #
    head2 = run_block([r1], H2, "wih2", "bh2", "whh2", "whead2", "bhead2")

    # ------------------------- single fused store ------------------------- #
    # sign = -1 on backcast rows, +1 on forecast rows (precomputed column):
    #   rows <  T : x0 - head1[:T] - head2[:T]  = final residual
    #   rows >= T : 0  + head1[T:] + head2[T:]  = forecast_1 + forecast_2
    sign_b = lane_bcast(c["sign"], TF)
    out_ref[...] = x0e + sign_b * (head1 + head2)


# ------------------------------ Param packing ------------------------------ #
def pack_stack_params(p1, p2, input_seqlen, forecast_seqlen):
    """Pack all block weights/biases (transposed) into one lane-dense f32 slab.

    Returns (slab [R, C], static column offsets, static meta dict).
    """
    T, F = input_seqlen, forecast_seqlen
    TF = T + F
    H1 = p1["w_hh"].shape[0]
    H2 = p2["w_hh"].shape[0]
    R = max(TF, T, H1, H2)

    def headw(p):   # merged backcast|forecast head weight, transposed: [TF, H]
        return jnp.concatenate([p["w_b"], p["w_f"]], axis=1).T

    def headb(p):   # merged head bias, transposed: [TF, 1]
        return jnp.concatenate([p["b_b"], p["b_f"]], axis=1).T

    sign = jnp.concatenate([-jnp.ones((T, 1), jnp.float32),
                            jnp.ones((F, 1), jnp.float32)], axis=0)

    items = [
        ("wih1", p1["w_ih"].T), ("bh1", p1["b_h"].T), ("whh1", p1["w_hh"].T),
        ("whead1", headw(p1)), ("bhead1", headb(p1)),
        ("wih2", p2["w_ih"].T), ("bh2", p2["b_h"].T), ("whh2", p2["w_hh"].T),
        ("whead2", headw(p2)), ("bhead2", headb(p2)),
        ("sign", sign),
    ]
    cols, padded, off = {}, [], 0
    for name, arr in items:
        arr = arr.astype(jnp.float32)
        cols[name] = off
        off += arr.shape[1]
        padded.append(jnp.pad(arr, ((0, R - arr.shape[0]), (0, 0))))
    slab = jnp.concatenate(padded, axis=1)
    meta = dict(T=T, F=F, H1=H1, H2=H2)
    return slab, cols, meta


# ------------------------------ Stack forward ------------------------------ #
def make_stack_forward(cols, meta):
    T, F, H1, H2 = meta["T"], meta["F"], meta["H1"], meta["H2"]
    TF = T + F
    vmem = functools.partial(pl.BlockSpec, memory_space=pltpu.MemorySpace.VMEM)

    @jax.jit
    def forward(inputs, params_slab):
        """inputs: [B, T, 2] -> (forecast [B, F, 1], input_estimate [B, T, 1])"""
        B = inputs.shape[0]

        # one lane-dense data slab: (x0 | x1), time on sublanes, batch on
        # lanes; pad F zero rows so the kernel's fused output trick works
        data = jnp.concatenate(
            [inputs[:, :, 0].T, inputs[:, :, 1].T], axis=1).astype(jnp.float32)
        data = jnp.pad(data, ((0, F), (0, 0)))                 # [TF, 2B]

        kernel = functools.partial(_stack_kernel, B=B, T=T, F=F,
                                   H1=H1, H2=H2, cols=cols)
        out = pl.pallas_call(
            kernel,
            out_shape=jax.ShapeDtypeStruct((TF, B), jnp.float32),
            in_specs=[vmem(), vmem()],
            out_specs=vmem(),
        )(data, params_slab)

        input_estimate = out[:T, :].T[:, :, None]              # [B, T, 1]
        forecast = out[T:, :].T[:, :, None]                    # [B, F, 1]
        return forecast, input_estimate

    return forward


# ------------------------------ JAX reference ------------------------------ #
def basic_block_ref(x_btc, p):
    B, T, _ = x_btc.shape
    H = p["w_ih"].shape[1]
    h = jnp.zeros((B, H), jnp.float32)
    for t in range(T):
        h = jnp.tanh(x_btc[:, t, :] @ p["w_ih"] + h @ p["w_hh"] + p["b_h"])
    backcast = h @ p["w_b"] + p["b_b"]
    fcast = h @ p["w_f"] + p["b_f"]
    resid = x_btc[:, :, 0] - backcast
    return fcast, resid


def stack_ref(inputs, p1, p2):
    f1, r1 = basic_block_ref(inputs, p1)
    f2, r2 = basic_block_ref(r1[:, :, None], p2)
    return (f1 + f2)[:, :, None], r2[:, :, None]


# ------------------------------- Param init -------------------------------- #
def init_block_params(key, input_size, hidden_size, estimate_seqlen, forecast_seqlen):
    ks = jax.random.split(key, 6)
    s = 0.1
    return {
        "w_ih": s * jax.random.normal(ks[0], (input_size, hidden_size), jnp.float32),
        "w_hh": s * jax.random.normal(ks[1], (hidden_size, hidden_size), jnp.float32),
        "b_h":  s * jax.random.normal(ks[2], (1, hidden_size), jnp.float32),
        "w_b":  s * jax.random.normal(ks[3], (hidden_size, estimate_seqlen), jnp.float32),
        "b_b":  jnp.zeros((1, estimate_seqlen), jnp.float32),
        "w_f":  s * jax.random.normal(ks[4], (hidden_size, forecast_seqlen), jnp.float32),
        "b_f":  jnp.zeros((1, forecast_seqlen), jnp.float32),
    }


# ---------------------------------- main ------------------------------------ #
if __name__ == "__main__":
    # Module defaults: input_size=2, hidden_size_list=[4,5,...], input_seqlen=14,
    # forecast_seqlen=3. Only the first two blocks are used by Stack.forward.
    batch = 4
    input_size = 2
    input_seqlen = 14
    forecast_seqlen = 3
    hidden_size_list = [4, 5, 6, 7, 8]

    key = jax.random.PRNGKey(0)
    k_x, k_b1, k_b2 = jax.random.split(key, 3)

    inputs = jax.random.normal(k_x, (batch, input_seqlen, input_size), jnp.float32)
    p1 = init_block_params(k_b1, input_size, hidden_size_list[0],
                           input_seqlen, forecast_seqlen)
    p2 = init_block_params(k_b2, 1, hidden_size_list[1],
                           input_seqlen, forecast_seqlen)

    # pack weights once (host-side), build the jitted forward
    params_slab, cols, meta = pack_stack_params(p1, p2, input_seqlen, forecast_seqlen)
    stack_forward = make_stack_forward(cols, meta)

    forecast, input_estimate = stack_forward(inputs, params_slab)
    forecast = jax.block_until_ready(forecast)
    input_estimate = jax.block_until_ready(input_estimate)

    # sanity check against a pure-JAX reference
    f_ref, e_ref = stack_ref(inputs, p1, p2)
    assert forecast.shape == (batch, forecast_seqlen, 1)
    assert input_estimate.shape == (batch, input_seqlen, 1)
    assert jnp.allclose(forecast, f_ref, atol=1e-5, rtol=1e-5)
    assert jnp.allclose(input_estimate, e_ref, atol=1e-5, rtol=1e-5)

    print("KERNEL_OK")
</pallas_src>

<mosaic_0001>
module attributes {stable_mosaic.version = 11 : i64} {
  func.func @_stack_kernel(%arg0: memref<17x8xf32, #tpu.memory_space<vmem>>, %arg1: memref<17x26xf32, #tpu.memory_space<vmem>>, %arg2: memref<17x4xf32, #tpu.memory_space<vmem>>) attributes {dimension_semantics = [], scalar_prefetch = 0 : i64, scratch_operands = 0 : i64, tpu.core_type = #tpu.core_type<tc>} {
    %c0 = arith.constant 0 : index
    %c0_0 = arith.constant 0 : index
    %0 = vector.load %arg0[%c0, %c0_0] : memref<17x8xf32, #tpu.memory_space<vmem>>, vector<17x4xf32>
    %c0_1 = arith.constant 0 : index
    %c4 = arith.constant 4 : index
    %1 = vector.load %arg0[%c0_1, %c4] : memref<17x8xf32, #tpu.memory_space<vmem>>, vector<17x4xf32>
    %2 = vector.extract_strided_slice %0 {offsets = [0, 0], sizes = [14, 4], strides = [1, 1]} : vector<17x4xf32> to vector<14x4xf32>
    %3 = vector.extract_strided_slice %1 {offsets = [0, 0], sizes = [14, 4], strides = [1, 1]} : vector<17x4xf32> to vector<14x4xf32>
    %c0_2 = arith.constant 0 : index
    %c0_3 = arith.constant 0 : index
    %4 = vector.load %arg1[%c0_2, %c0_3] : memref<17x26xf32, #tpu.memory_space<vmem>>, vector<4x1xf32>
    %5 = vector.shape_cast %4 : vector<4x1xf32> to vector<4x1xf32>
    %6 = vector.broadcast %5 : vector<4x1xf32> to vector<4x4xf32>
    %c0_4 = arith.constant 0 : index
    %c1 = arith.constant 1 : index
    %7 = vector.load %arg1[%c0_4, %c1] : memref<17x26xf32, #tpu.memory_space<vmem>>, vector<4x1xf32>
    %8 = vector.shape_cast %7 : vector<4x1xf32> to vector<4x1xf32>
    %9 = vector.broadcast %8 : vector<4x1xf32> to vector<4x4xf32>
    %c0_5 = arith.constant 0 : index
    %c2 = arith.constant 2 : index
    %10 = vector.load %arg1[%c0_5, %c2] : memref<17x26xf32, #tpu.memory_space<vmem>>, vector<4x1xf32>
    %11 = vector.shape_cast %10 : vector<4x1xf32> to vector<4x1xf32>
    %12 = vector.broadcast %11 : vector<4x1xf32> to vector<4x4xf32>
    %c0_6 = arith.constant 0 : index
    %c3 = arith.constant 3 : index
    %13 = vector.load %arg1[%c0_6, %c3] : memref<17x26xf32, #tpu.memory_space<vmem>>, vector<4x1xf32>
    %14 = vector.shape_cast %13 : vector<4x1xf32> to vector<4x1xf32>
    %15 = vector.broadcast %14 : vector<4x1xf32> to vector<4x4xf32>
    %c0_7 = arith.constant 0 : index
    %c4_8 = arith.constant 4 : index
    %16 = vector.load %arg1[%c0_7, %c4_8] : memref<17x26xf32, #tpu.memory_space<vmem>>, vector<4x1xf32>
    %17 = vector.shape_cast %16 : vector<4x1xf32> to vector<4x1xf32>
    %18 = vector.broadcast %17 : vector<4x1xf32> to vector<4x4xf32>
    %c0_9 = arith.constant 0 : index
    %c5 = arith.constant 5 : index
    %19 = vector.load %arg1[%c0_9, %c5] : memref<17x26xf32, #tpu.memory_space<vmem>>, vector<4x1xf32>
    %20 = vector.shape_cast %19 : vector<4x1xf32> to vector<4x1xf32>
    %21 = vector.broadcast %20 : vector<4x1xf32> to vector<4x4xf32>
    %c0_10 = arith.constant 0 : index
    %c6 = arith.constant 6 : index
    %22 = vector.load %arg1[%c0_10, %c6] : memref<17x26xf32, #tpu.memory_space<vmem>>, vector<4x1xf32>
    %23 = vector.shape_cast %22 : vector<4x1xf32> to vector<4x1xf32>
    %24 = vector.broadcast %23 : vector<4x1xf32> to vector<4x4xf32>
    %c0_11 = arith.constant 0 : index
    %c7 = arith.constant 7 : index
    %25 = vector.load %arg1[%c0_11, %c7] : memref<17x26xf32, #tpu.memory_space<vmem>>, vector<17x1xf32>
    %26 = vector.shape_cast %25 : vector<17x1xf32> to vector<17x1xf32>
    %27 = vector.broadcast %26 : vector<17x1xf32> to vector<17x4xf32>
    %c0_12 = arith.constant 0 : index
    %c8 = arith.constant 8 : index
    %28 = vector.load %arg1[%c0_12, %c8] : memref<17x26xf32, #tpu.memory_space<vmem>>, vector<17x1xf32>
    %29 = vector.shape_cast %28 : vector<17x1xf32> to vector<17x1xf32>
    %30 = vector.broadcast %29 : vector<17x1xf32> to vector<17x4xf32>
    %c0_13 = arith.constant 0 : index
    %c9 = arith.constant 9 : index
    %31 = vector.load %arg1[%c0_13, %c9] : memref<17x26xf32, #tpu.memory_space<vmem>>, vector<17x1xf32>
    %32 = vector.shape_cast %31 : vector<17x1xf32> to vector<17x1xf32>
    %33 = vector.broadcast %32 : vector<17x1xf32> to vector<17x4xf32>
    %c0_14 = arith.constant 0 : index
    %c10 = arith.constant 10 : index
    %34 = vector.load %arg1[%c0_14, %c10] : memref<17x26xf32, #tpu.memory_space<vmem>>, vector<17x1xf32>
    %35 = vector.shape_cast %34 : vector<17x1xf32> to vector<17x1xf32>
    %36 = vector.broadcast %35 : vector<17x1xf32> to vector<17x4xf32>
    %c0_15 = arith.constant 0 : index
    %c11 = arith.constant 11 : index
    %37 = vector.load %arg1[%c0_15, %c11] : memref<17x26xf32, #tpu.memory_space<vmem>>, vector<17x1xf32>
    %38 = vector.shape_cast %37 : vector<17x1xf32> to vector<17x1xf32>
    %39 = vector.broadcast %38 : vector<17x1xf32> to vector<17x4xf32>
    %40 = vector.extract_strided_slice %2 {offsets = [0, 0], sizes = [1, 4], strides = [1, 1]} : vector<14x4xf32> to vector<1x4xf32>
    %41 = vector.broadcast %40 : vector<1x4xf32> to vector<4x4xf32>
    %42 = arith.mulf %6, %41 : vector<4x4xf32>
    %43 = arith.addf %12, %42 : vector<4x4xf32>
    %44 = vector.extract_strided_slice %3 {offsets = [0, 0], sizes = [1, 4], strides = [1, 1]} : vector<14x4xf32> to vector<1x4xf32>
    %45 = vector.broadcast %44 : vector<1x4xf32> to vector<4x4xf32>
    %46 = arith.mulf %9, %45 : vector<4x4xf32>
    %47 = arith.addf %43, %46 : vector<4x4xf32>
    %48 = vector.extract_strided_slice %2 {offsets = [1, 0], sizes = [1, 4], strides = [1, 1]} : vector<14x4xf32> to vector<1x4xf32>
    %49 = vector.broadcast %48 : vector<1x4xf32> to vector<4x4xf32>
    %50 = arith.mulf %6, %49 : vector<4x4xf32>
    %51 = arith.addf %12, %50 : vector<4x4xf32>
    %52 = vector.extract_strided_slice %3 {offsets = [1, 0], sizes = [1, 4], strides = [1, 1]} : vector<14x4xf32> to vector<1x4xf32>
    %53 = vector.broadcast %52 : vector<1x4xf32> to vector<4x4xf32>
    %54 = arith.mulf %9, %53 : vector<4x4xf32>
    %55 = arith.addf %51, %54 : vector<4x4xf32>
    %56 = vector.extract_strided_slice %2 {offsets = [2, 0], sizes = [1, 4], strides = [1, 1]} : vector<14x4xf32> to vector<1x4xf32>
    %57 = vector.broadcast %56 : vector<1x4xf32> to vector<4x4xf32>
    %58 = arith.mulf %6, %57 : vector<4x4xf32>
    %59 = arith.addf %12, %58 : vector<4x4xf32>
    %60 = vector.extract_strided_slice %3 {offsets = [2, 0], sizes = [1, 4], strides = [1, 1]} : vector<14x4xf32> to vector<1x4xf32>
    %61 = vector.broadcast %60 : vector<1x4xf32> to vector<4x4xf32>
    %62 = arith.mulf %9, %61 : vector<4x4xf32>
    %63 = arith.addf %59, %62 : vector<4x4xf32>
    %64 = vector.extract_strided_slice %2 {offsets = [3, 0], sizes = [1, 4], strides = [1, 1]} : vector<14x4xf32> to vector<1x4xf32>
    %65 = vector.broadcast %64 : vector<1x4xf32> to vector<4x4xf32>
    %66 = arith.mulf %6, %65 : vector<4x4xf32>
    %67 = arith.addf %12, %66 : vector<4x4xf32>
    %68 = vector.extract_strided_slice %3 {offsets = [3, 0], sizes = [1, 4], strides = [1, 1]} : vector<14x4xf32> to vector<1x4xf32>
    %69 = vector.broadcast %68 : vector<1x4xf32> to vector<4x4xf32>
    %70 = arith.mulf %9, %69 : vector<4x4xf32>
    %71 = arith.addf %67, %70 : vector<4x4xf32>
    %72 = vector.extract_strided_slice %2 {offsets = [4, 0], sizes = [1, 4], strides = [1, 1]} : vector<14x4xf32> to vector<1x4xf32>
    %73 = vector.broadcast %72 : vector<1x4xf32> to vector<4x4xf32>
    %74 = arith.mulf %6, %73 : vector<4x4xf32>
    %75 = arith.addf %12, %74 : vector<4x4xf32>
    %76 = vector.extract_strided_slice %3 {offsets = [4, 0], sizes = [1, 4], strides = [1, 1]} : vector<14x4xf32> to vector<1x4xf32>
    %77 = vector.broadcast %76 : vector<1x4xf32> to vector<4x4xf32>
    %78 = arith.mulf %9, %77 : vector<4x4xf32>
    %79 = arith.addf %75, %78 : vector<4x4xf32>
    %80 = vector.extract_strided_slice %2 {offsets = [5, 0], sizes = [1, 4], strides = [1, 1]} : vector<14x4xf32> to vector<1x4xf32>
    %81 = vector.broadcast %80 : vector<1x4xf32> to vector<4x4xf32>
    %82 = arith.mulf %6, %81 : vector<4x4xf32>
    %83 = arith.addf %12, %82 : vector<4x4xf32>
    %84 = vector.extract_strided_slice %3 {offsets = [5, 0], sizes = [1, 4], strides = [1, 1]} : vector<14x4xf32> to vector<1x4xf32>
    %85 = vector.broadcast %84 : vector<1x4xf32> to vector<4x4xf32>
    %86 = arith.mulf %9, %85 : vector<4x4xf32>
    %87 = arith.addf %83, %86 : vector<4x4xf32>
    %88 = vector.extract_strided_slice %2 {offsets = [6, 0], sizes = [1, 4], strides = [1, 1]} : vector<14x4xf32> to vector<1x4xf32>
    %89 = vector.broadcast %88 : vector<1x4xf32> to vector<4x4xf32>
    %90 = arith.mulf %6, %89 : vector<4x4xf32>
    %91 = arith.addf %12, %90 : vector<4x4xf32>
    %92 = vector.extract_strided_slice %3 {offsets = [6, 0], sizes = [1, 4], strides = [1, 1]} : vector<14x4xf32> to vector<1x4xf32>
    %93 = vector.broadcast %92 : vector<1x4xf32> to vector<4x4xf32>
    %94 = arith.mulf %9, %93 : vector<4x4xf32>
    %95 = arith.addf %91, %94 : vector<4x4xf32>
    %96 = vector.extract_strided_slice %2 {offsets = [7, 0], sizes = [1, 4], strides = [1, 1]} : vector<14x4xf32> to vector<1x4xf32>
    %97 = vector.broadcast %96 : vector<1x4xf32> to vector<4x4xf32>
    %98 = arith.mulf %6, %97 : vector<4x4xf32>
    %99 = arith.addf %12, %98 : vector<4x4xf32>
    %100 = vector.extract_strided_slice %3 {offsets = [7, 0], sizes = [1, 4], strides = [1, 1]} : vector<14x4xf32> to vector<1x4xf32>
    %101 = vector.broadcast %100 : vector<1x4xf32> to vector<4x4xf32>
    %102 = arith.mulf %9, %101 : vector<4x4xf32>
    %103 = arith.addf %99, %102 : vector<4x4xf32>
    %104 = vector.extract_strided_slice %2 {offsets = [8, 0], sizes = [1, 4], strides = [1, 1]} : vector<14x4xf32> to vector<1x4xf32>
    %105 = vector.broadcast %104 : vector<1x4xf32> to vector<4x4xf32>
    %106 = arith.mulf %6, %105 : vector<4x4xf32>
    %107 = arith.addf %12, %106 : vector<4x4xf32>
    %108 = vector.extract_strided_slice %3 {offsets = [8, 0], sizes = [1, 4], strides = [1, 1]} : vector<14x4xf32> to vector<1x4xf32>
    %109 = vector.broadcast %108 : vector<1x4xf32> to vector<4x4xf32>
    %110 = arith.mulf %9, %109 : vector<4x4xf32>
    %111 = arith.addf %107, %110 : vector<4x4xf32>
    %112 = vector.extract_strided_slice %2 {offsets = [9, 0], sizes = [1, 4], strides = [1, 1]} : vector<14x4xf32> to vector<1x4xf32>
    %113 = vector.broadcast %112 : vector<1x4xf32> to vector<4x4xf32>
    %114 = arith.mulf %6, %113 : vector<4x4xf32>
    %115 = arith.addf %12, %114 : vector<4x4xf32>
    %116 = vector.extract_strided_slice %3 {offsets = [9, 0], sizes = [1, 4], strides = [1, 1]} : vector<14x4xf32> to vector<1x4xf32>
    %117 = vector.broadcast %116 : vector<1x4xf32> to vector<4x4xf32>
    %118 = arith.mulf %9, %117 : vector<4x4xf32>
    %119 = arith.addf %115, %118 : vector<4x4xf32>
    %120 = vector.extract_strided_slice %2 {offsets = [10, 0], sizes = [1, 4], strides = [1, 1]} : vector<14x4xf32> to vector<1x4xf32>
    %121 = vector.broadcast %120 : vector<1x4xf32> to vector<4x4xf32>
    %122 = arith.mulf %6, %121 : vector<4x4xf32>
    %123 = arith.addf %12, %122 : vector<4x4xf32>
    %124 = vector.extract_strided_slice %3 {offsets = [10, 0], sizes = [1, 4], strides = [1, 1]} : vector<14x4xf32> to vector<1x4xf32>
    %125 = vector.broadcast %124 : vector<1x4xf32> to vector<4x4xf32>
    %126 = arith.mulf %9, %125 : vector<4x4xf32>
    %127 = arith.addf %123, %126 : vector<4x4xf32>
    %128 = vector.extract_strided_slice %2 {offsets = [11, 0], sizes = [1, 4], strides = [1, 1]} : vector<14x4xf32> to vector<1x4xf32>
    %129 = vector.broadcast %128 : vector<1x4xf32> to vector<4x4xf32>
    %130 = arith.mulf %6, %129 : vector<4x4xf32>
    %131 = arith.addf %12, %130 : vector<4x4xf32>
    %132 = vector.extract_strided_slice %3 {offsets = [11, 0], sizes = [1, 4], strides = [1, 1]} : vector<14x4xf32> to vector<1x4xf32>
    %133 = vector.broadcast %132 : vector<1x4xf32> to vector<4x4xf32>
    %134 = arith.mulf %9, %133 : vector<4x4xf32>
    %135 = arith.addf %131, %134 : vector<4x4xf32>
    %136 = vector.extract_strided_slice %2 {offsets = [12, 0], sizes = [1, 4], strides = [1, 1]} : vector<14x4xf32> to vector<1x4xf32>
    %137 = vector.broadcast %136 : vector<1x4xf32> to vector<4x4xf32>
    %138 = arith.mulf %6, %137 : vector<4x4xf32>
    %139 = arith.addf %12, %138 : vector<4x4xf32>
    %140 = vector.extract_strided_slice %3 {offsets = [12, 0], sizes = [1, 4], strides = [1, 1]} : vector<14x4xf32> to vector<1x4xf32>
    %141 = vector.broadcast %140 : vector<1x4xf32> to vector<4x4xf32>
    %142 = arith.mulf %9, %141 : vector<4x4xf32>
    %143 = arith.addf %139, %142 : vector<4x4xf32>
    %144 = vector.extract_strided_slice %2 {offsets = [13, 0], sizes = [1, 4], strides = [1, 1]} : vector<14x4xf32> to vector<1x4xf32>
    %145 = vector.broadcast %144 : vector<1x4xf32> to vector<4x4xf32>
    %146 = arith.mulf %6, %145 : vector<4x4xf32>
    %147 = arith.addf %12, %146 : vector<4x4xf32>
    %148 = vector.extract_strided_slice %3 {offsets = [13, 0], sizes = [1, 4], strides = [1, 1]} : vector<14x4xf32> to vector<1x4xf32>
    %149 = vector.broadcast %148 : vector<1x4xf32> to vector<4x4xf32>
    %150 = arith.mulf %9, %149 : vector<4x4xf32>
    %151 = arith.addf %147, %150 : vector<4x4xf32>
    %152 = math.tanh %47 : vector<4x4xf32>
    %153 = vector.extract_strided_slice %152 {offsets = [0, 0], sizes = [1, 4], strides = [1, 1]} : vector<4x4xf32> to vector<1x4xf32>
    %154 = vector.broadcast %153 : vector<1x4xf32> to vector<4x4xf32>
    %155 = arith.mulf %15, %154 : vector<4x4xf32>
    %156 = arith.addf %55, %155 : vector<4x4xf32>
    %157 = vector.extract_strided_slice %152 {offsets = [1, 0], sizes = [1, 4], strides = [1, 1]} : vector<4x4xf32> to vector<1x4xf32>
    %158 = vector.broadcast %157 : vector<1x4xf32> to vector<4x4xf32>
    %159 = arith.mulf %18, %158 : vector<4x4xf32>
    %160 = arith.addf %156, %159 : vector<4x4xf32>
    %161 = vector.extract_strided_slice %152 {offsets = [2, 0], sizes = [1, 4], strides = [1, 1]} : vector<4x4xf32> to vector<1x4xf32>
    %162 = vector.broadcast %161 : vector<1x4xf32> to vector<4x4xf32>
    %163 = arith.mulf %21, %162 : vector<4x4xf32>
    %164 = arith.addf %160, %163 : vector<4x4xf32>
    %165 = vector.extract_strided_slice %152 {offsets = [3, 0], sizes = [1, 4], strides = [1, 1]} : vector<4x4xf32> to vector<1x4xf32>
    %166 = vector.broadcast %165 : vector<1x4xf32> to vector<4x4xf32>
    %167 = arith.mulf %24, %166 : vector<4x4xf32>
    %168 = arith.addf %164, %167 : vector<4x4xf32>
    %169 = math.tanh %168 : vector<4x4xf32>
    %170 = vector.extract_strided_slice %169 {offsets = [0, 0], sizes = [1, 4], strides = [1, 1]} : vector<4x4xf32> to vector<1x4xf32>
    %171 = vector.broadcast %170 : vector<1x4xf32> to vector<4x4xf32>
    %172 = arith.mulf %15, %171 : vector<4x4xf32>
    %173 = arith.addf %63, %172 : vector<4x4xf32>
    %174 = vector.extract_strided_slice %169 {offsets = [1, 0], sizes = [1, 4], strides = [1, 1]} : vector<4x4xf32> to vector<1x4xf32>
    %175 = vector.broadcast %174 : vector<1x4xf32> to vector<4x4xf32>
    %176 = arith.mulf %18, %175 : vector<4x4xf32>
    %177 = arith.addf %173, %176 : vector<4x4xf32>
    %178 = vector.extract_strided_slice %169 {offsets = [2, 0], sizes = [1, 4], strides = [1, 1]} : vector<4x4xf32> to vector<1x4xf32>
    %179 = vector.broadcast %178 : vector<1x4xf32> to vector<4x4xf32>
    %180 = arith.mulf %21, %179 : vector<4x4xf32>
    %181 = arith.addf %177, %180 : vector<4x4xf32>
    %182 = vector.extract_strided_slice %169 {offsets = [3, 0], sizes = [1, 4], strides = [1, 1]} : vector<4x4xf32> to vector<1x4xf32>
    %183 = vector.broadcast %182 : vector<1x4xf32> to vector<4x4xf32>
    %184 = arith.mulf %24, %183 : vector<4x4xf32>
    %185 = arith.addf %181, %184 : vector<4x4xf32>
    %186 = math.tanh %185 : vector<4x4xf32>
    %187 = vector.extract_strided_slice %186 {offsets = [0, 0], sizes = [1, 4], strides = [1, 1]} : vector<4x4xf32> to vector<1x4xf32>
    %188 = vector.broadcast %187 : vector<1x4xf32> to vector<4x4xf32>
    %189 = arith.mulf %15, %188 : vector<4x4xf32>
    %190 = arith.addf %71, %189 : vector<4x4xf32>
    %191 = vector.extract_strided_slice %186 {offsets = [1, 0], sizes = [1, 4], strides = [1, 1]} : vector<4x4xf32> to vector<1x4xf32>
    %192 = vector.broadcast %191 : vector<1x4xf32> to vector<4x4xf32>
    %193 = arith.mulf %18, %192 : vector<4x4xf32>
    %194 = arith.addf %190, %193 : vector<4x4xf32>
    %195 = vector.extract_strided_slice %186 {offsets = [2, 0], sizes = [1, 4], strides = [1, 1]} : vector<4x4xf32> to vector<1x4xf32>
    %196 = vector.broadcast %195 : vector<1x4xf32> to vector<4x4xf32>
    %197 = arith.mulf %21, %196 : vector<4x4xf32>
    %198 = arith.addf %194, %197 : vector<4x4xf32>
    %199 = vector.extract_strided_slice %186 {offsets = [3, 0], sizes = [1, 4], strides = [1, 1]} : vector<4x4xf32> to vector<1x4xf32>
    %200 = vector.broadcast %199 : vector<1x4xf32> to vector<4x4xf32>
    %201 = arith.mulf %24, %200 : vector<4x4xf32>
    %202 = arith.addf %198, %201 : vector<4x4xf32>
    %203 = math.tanh %202 : vector<4x4xf32>
    %204 = vector.extract_strided_slice %203 {offsets = [0, 0], sizes = [1, 4], strides = [1, 1]} : vector<4x4xf32> to vector<1x4xf32>
    %205 = vector.broadcast %204 : vector<1x4xf32> to vector<4x4xf32>
    %206 = arith.mulf %15, %205 : vector<4x4xf32>
    %207 = arith.addf %79, %206 : vector<4x4xf32>
    %208 = vector.extract_strided_slice %203 {offsets = [1, 0], sizes = [1, 4], strides = [1, 1]} : vector<4x4xf32> to vector<1x4xf32>
    %209 = vector.broadcast %208 : vector<1x4xf32> to vector<4x4xf32>
    %210 = arith.mulf %18, %209 : vector<4x4xf32>
    %211 = arith.addf %207, %210 : vector<4x4xf32>
    %212 = vector.extract_strided_slice %203 {offsets = [2, 0], sizes = [1, 4], strides = [1, 1]} : vector<4x4xf32> to vector<1x4xf32>
    %213 = vector.broadcast %212 : vector<1x4xf32> to vector<4x4xf32>
    %214 = arith.mulf %21, %213 : vector<4x4xf32>
    %215 = arith.addf %211, %214 : vector<4x4xf32>
    %216 = vector.extract_strided_slice %203 {offsets = [3, 0], sizes = [1, 4], strides = [1, 1]} : vector<4x4xf32> to vector<1x4xf32>
    %217 = vector.broadcast %216 : vector<1x4xf32> to vector<4x4xf32>
    %218 = arith.mulf %24, %217 : vector<4x4xf32>
    %219 = arith.addf %215, %218 : vector<4x4xf32>
    %220 = math.tanh %219 : vector<4x4xf32>
    %221 = vector.extract_strided_slice %220 {offsets = [0, 0], sizes = [1, 4], strides = [1, 1]} : vector<4x4xf32> to vector<1x4xf32>
    %222 = vector.broadcast %221 : vector<1x4xf32> to vector<4x4xf32>
    %223 = arith.mulf %15, %222 : vector<4x4xf32>
    %224 = arith.addf %87, %223 : vector<4x4xf32>
    %225 = vector.extract_strided_slice %220 {offsets = [1, 0], sizes = [1, 4], strides = [1, 1]} : vector<4x4xf32> to vector<1x4xf32>
    %226 = vector.broadcast %225 : vector<1x4xf32> to vector<4x4xf32>
    %227 = arith.mulf %18, %226 : vector<4x4xf32>
    %228 = arith.addf %224, %227 : vector<4x4xf32>
    %229 = vector.extract_strided_slice %220 {offsets = [2, 0], sizes = [1, 4], strides = [1, 1]} : vector<4x4xf32> to vector<1x4xf32>
    %230 = vector.broadcast %229 : vector<1x4xf32> to vector<4x4xf32>
    %231 = arith.mulf %21, %230 : vector<4x4xf32>
    %232 = arith.addf %228, %231 : vector<4x4xf32>
    %233 = vector.extract_strided_slice %220 {offsets = [3, 0], sizes = [1, 4], strides = [1, 1]} : vector<4x4xf32> to vector<1x4xf32>
    %234 = vector.broadcast %233 : vector<1x4xf32> to vector<4x4xf32>
    %235 = arith.mulf %24, %234 : vector<4x4xf32>
    %236 = arith.addf %232, %235 : vector<4x4xf32>
    %237 = math.tanh %236 : vector<4x4xf32>
    %238 = vector.extract_strided_slice %237 {offsets = [0, 0], sizes = [1, 4], strides = [1, 1]} : vector<4x4xf32> to vector<1x4xf32>
    %239 = vector.broadcast %238 : vector<1x4xf32> to vector<4x4xf32>
    %240 = arith.mulf %15, %239 : vector<4x4xf32>
    %241 = arith.addf %95, %240 : vector<4x4xf32>
    %242 = vector.extract_strided_slice %237 {offsets = [1, 0], sizes = [1, 4], strides = [1, 1]} : vector<4x4xf32> to vector<1x4xf32>
    %243 = vector.broadcast %242 : vector<1x4xf32> to vector<4x4xf32>
    %244 = arith.mulf %18, %243 : vector<4x4xf32>
    %245 = arith.addf %241, %244 : vector<4x4xf32>
    %246 = vector.extract_strided_slice %237 {offsets = [2, 0], sizes = [1, 4], strides = [1, 1]} : vector<4x4xf32> to vector<1x4xf32>
    %247 = vector.broadcast %246 : vector<1x4xf32> to vector<4x4xf32>
    %248 = arith.mulf %21, %247 : vector<4x4xf32>
    %249 = arith.addf %245, %248 : vector<4x4xf32>
    %250 = vector.extract_strided_slice %237 {offsets = [3, 0], sizes = [1, 4], strides = [1, 1]} : vector<4x4xf32> to vector<1x4xf32>
    %251 = vector.broadcast %250 : vector<1x4xf32> to vector<4x4xf32>
    %252 = arith.mulf %24, %251 : vector<4x4xf32>
    %253 = arith.addf %249, %252 : vector<4x4xf32>
    %254 = math.tanh %253 : vector<4x4xf32>
    %255 = vector.extract_strided_slice %254 {offsets = [0, 0], sizes = [1, 4], strides = [1, 1]} : vector<4x4xf32> to vector<1x4xf32>
    %256 = vector.broadcast %255 : vector<1x4xf32> to vector<4x4xf32>
    %257 = arith.mulf %15, %256 : vector<4x4xf32>
    %258 = arith.addf %103, %257 : vector<4x4xf32>
    %259 = vector.extract_strided_slice %254 {offsets = [1, 0], sizes = [1, 4], strides = [1, 1]} : vector<4x4xf32> to vector<1x4xf32>
    %260 = vector.broadcast %259 : vector<1x4xf32> to vector<4x4xf32>
    %261 = arith.mulf %18, %260 : vector<4x4xf32>
    %262 = arith.addf %258, %261 : vector<4x4xf32>
    %263 = vector.extract_strided_slice %254 {offsets = [2, 0], sizes = [1, 4], strides = [1, 1]} : vector<4x4xf32> to vector<1x4xf32>
    %264 = vector.broadcast %263 : vector<1x4xf32> to vector<4x4xf32>
    %265 = arith.mulf %21, %264 : vector<4x4xf32>
    %266 = arith.addf %262, %265 : vector<4x4xf32>
    %267 = vector.extract_strided_slice %254 {offsets = [3, 0], sizes = [1, 4], strides = [1, 1]} : vector<4x4xf32> to vector<1x4xf32>
    %268 = vector.broadcast %267 : vector<1x4xf32> to vector<4x4xf32>
    %269 = arith.mulf %24, %268 : vector<4x4xf32>
    %270 = arith.addf %266, %269 : vector<4x4xf32>
    %271 = math.tanh %270 : vector<4x4xf32>
    %272 = vector.extract_strided_slice %271 {offsets = [0, 0], sizes = [1, 4], strides = [1, 1]} : vector<4x4xf32> to vector<1x4xf32>
    %273 = vector.broadcast %272 : vector<1x4xf32> to vector<4x4xf32>
    %274 = arith.mulf %15, %273 : vector<4x4xf32>
    %275 = arith.addf %111, %274 : vector<4x4xf32>
    %276 = vector.extract_strided_slice %271 {offsets = [1, 0], sizes = [1, 4], strides = [1, 1]} : vector<4x4xf32> to vector<1x4xf32>
    %277 = vector.broadcast %276 : vector<1x4xf32> to vector<4x4xf32>
    %278 = arith.mulf %18, %277 : vector<4x4xf32>
    %279 = arith.addf %275, %278 : vector<4x4xf32>
    %280 = vector.extract_strided_slice %271 {offsets = [2, 0], sizes = [1, 4], strides = [1, 1]} : vector<4x4xf32> to vector<1x4xf32>
    %281 = vector.broadcast %280 : vector<1x4xf32> to vector<4x4xf32>
    %282 = arith.mulf %21, %281 : vector<4x4xf32>
    %283 = arith.addf %279, %282 : vector<4x4xf32>
    %284 = vector.extract_strided_slice %271 {offsets = [3, 0], sizes = [1, 4], strides = [1, 1]} : vector<4x4xf32> to vector<1x4xf32>
    %285 = vector.broadcast %284 : vector<1x4xf32> to vector<4x4xf32>
    %286 = arith.mulf %24, %285 : vector<4x4xf32>
    %287 = arith.addf %283, %286 : vector<4x4xf32>
    %288 = math.tanh %287 : vector<4x4xf32>
    %289 = vector.extract_strided_slice %288 {offsets = [0, 0], sizes = [1, 4], strides = [1, 1]} : vector<4x4xf32> to vector<1x4xf32>
    %290 = vector.broadcast %289 : vector<1x4xf32> to vector<4x4xf32>
    %291 = arith.mulf %15, %290 : vector<4x4xf32>
    %292 = arith.addf %119, %291 : vector<4x4xf32>
    %293 = vector.extract_strided_slice %288 {offsets = [1, 0], sizes = [1, 4], strides = [1, 1]} : vector<4x4xf32> to vector<1x4xf32>
    %294 = vector.broadcast %293 : vector<1x4xf32> to vector<4x4xf32>
    %295 = arith.mulf %18, %294 : vector<4x4xf32>
    %296 = arith.addf %292, %295 : vector<4x4xf32>
    %297 = vector.extract_strided_slice %288 {offsets = [2, 0], sizes = [1, 4], strides = [1, 1]} : vector<4x4xf32> to vector<1x4xf32>
    %298 = vector.broadcast %297 : vector<1x4xf32> to vector<4x4xf32>
    %299 = arith.mulf %21, %298 : vector<4x4xf32>
    %300 = arith.addf %296, %299 : vector<4x4xf32>
    %301 = vector.extract_strided_slice %288 {offsets = [3, 0], sizes = [1, 4], strides = [1, 1]} : vector<4x4xf32> to vector<1x4xf32>
    %302 = vector.broadcast %301 : vector<1x4xf32> to vector<4x4xf32>
    %303 = arith.mulf %24, %302 : vector<4x4xf32>
    %304 = arith.addf %300, %303 : vector<4x4xf32>
    %305 = math.tanh %304 : vector<4x4xf32>
    %306 = vector.extract_strided_slice %305 {offsets = [0, 0], sizes = [1, 4], strides = [1, 1]} : vector<4x4xf32> to vector<1x4xf32>
    %307 = vector.broadcast %306 : vector<1x4xf32> to vector<4x4xf32>
    %308 = arith.mulf %15, %307 : vector<4x4xf32>
    %309 = arith.addf %127, %308 : vector<4x4xf32>
    %310 = vector.extract_strided_slice %305 {offsets = [1, 0], sizes = [1, 4], strides = [1, 1]} : vector<4x4xf32> to vector<1x4xf32>
    %311 = vector.broadcast %310 : vector<1x4xf32> to vector<4x4xf32>
    %312 = arith.mulf %18, %311 : vector<4x4xf32>
    %313 = arith.addf %309, %312 : vector<4x4xf32>
    %314 = vector.extract_strided_slice %305 {offsets = [2, 0], sizes = [1, 4], strides = [1, 1]} : vector<4x4xf32> to vector<1x4xf32>
    %315 = vector.broadcast %314 : vector<1x4xf32> to vector<4x4xf32>
    %316 = arith.mulf %21, %315 : vector<4x4xf32>
    %317 = arith.addf %313, %316 : vector<4x4xf32>
    %318 = vector.extract_strided_slice %305 {offsets = [3, 0], sizes = [1, 4], strides = [1, 1]} : vector<4x4xf32> to vector<1x4xf32>
    %319 = vector.broadcast %318 : vector<1x4xf32> to vector<4x4xf32>
    %320 = arith.mulf %24, %319 : vector<4x4xf32>
    %321 = arith.addf %317, %320 : vector<4x4xf32>
    %322 = math.tanh %321 : vector<4x4xf32>
    %323 = vector.extract_strided_slice %322 {offsets = [0, 0], sizes = [1, 4], strides = [1, 1]} : vector<4x4xf32> to vector<1x4xf32>
    %324 = vector.broadcast %323 : vector<1x4xf32> to vector<4x4xf32>
    %325 = arith.mulf %15, %324 : vector<4x4xf32>
    %326 = arith.addf %135, %325 : vector<4x4xf32>
    %327 = vector.extract_strided_slice %322 {offsets = [1, 0], sizes = [1, 4], strides = [1, 1]} : vector<4x4xf32> to vector<1x4xf32>
    %328 = vector.broadcast %327 : vector<1x4xf32> to vector<4x4xf32>
    %329 = arith.mulf %18, %328 : vector<4x4xf32>
    %330 = arith.addf %326, %329 : vector<4x4xf32>
    %331 = vector.extract_strided_slice %322 {offsets = [2, 0], sizes = [1, 4], strides = [1, 1]} : vector<4x4xf32> to vector<1x4xf32>
    %332 = vector.broadcast %331 : vector<1x4xf32> to vector<4x4xf32>
    %333 = arith.mulf %21, %332 : vector<4x4xf32>
    %334 = arith.addf %330, %333 : vector<4x4xf32>
    %335 = vector.extract_strided_slice %322 {offsets = [3, 0], sizes = [1, 4], strides = [1, 1]} : vector<4x4xf32> to vector<1x4xf32>
    %336 = vector.broadcast %335 : vector<1x4xf32> to vector<4x4xf32>
    %337 = arith.mulf %24, %336 : vector<4x4xf32>
    %338 = arith.addf %334, %337 : vector<4x4xf32>
    %339 = math.tanh %338 : vector<4x4xf32>
    %340 = vector.extract_strided_slice %339 {offsets = [0, 0], sizes = [1, 4], strides = [1, 1]} : vector<4x4xf32> to vector<1x4xf32>
    %341 = vector.broadcast %340 : vector<1x4xf32> to vector<4x4xf32>
    %342 = arith.mulf %15, %341 : vector<4x4xf32>
    %343 = arith.addf %143, %342 : vector<4x4xf32>
    %344 = vector.extract_strided_slice %339 {offsets = [1, 0], sizes = [1, 4], strides = [1, 1]} : vector<4x4xf32> to vector<1x4xf32>
    %345 = vector.broadcast %344 : vector<1x4xf32> to vector<4x4xf32>
    %346 = arith.mulf %18, %345 : vector<4x4xf32>
    %347 = arith.addf %343, %346 : vector<4x4xf32>
    %348 = vector.extract_strided_slice %339 {offsets = [2, 0], sizes = [1, 4], strides = [1, 1]} : vector<4x4xf32> to vector<1x4xf32>
    %349 = vector.broadcast %348 : vector<1x4xf32> to vector<4x4xf32>
    %350 = arith.mulf %21, %349 : vector<4x4xf32>
    %351 = arith.addf %347, %350 : vector<4x4xf32>
    %352 = vector.extract_strided_slice %339 {offsets = [3, 0], sizes = [1, 4], strides = [1, 1]} : vector<4x4xf32> to vector<1x4xf32>
    %353 = vector.broadcast %352 : vector<1x4xf32> to vector<4x4xf32>
    %354 = arith.mulf %24, %353 : vector<4x4xf32>
    %355 = arith.addf %351, %354 : vector<4x4xf32>
    %356 = math.tanh %355 : vector<4x4xf32>
    %357 = vector.extract_strided_slice %356 {offsets = [0, 0], sizes = [1, 4], strides = [1, 1]} : vector<4x4xf32> to vector<1x4xf32>
    %358 = vector.broadcast %357 : vector<1x4xf32> to vector<4x4xf32>
    %359 = arith.mulf %15, %358 : vector<4x4xf32>
    %360 = arith.addf %151, %359 : vector<4x4xf32>
    %361 = vector.extract_strided_slice %356 {offsets = [1, 0], sizes = [1, 4], strides = [1, 1]} : vector<4x4xf32> to vector<1x4xf32>
    %362 = vector.broadcast %361 : vector<1x4xf32> to vector<4x4xf32>
    %363 = arith.mulf %18, %362 : vector<4x4xf32>
    %364 = arith.addf %360, %363 : vector<4x4xf32>
    %365 = vector.extract_strided_slice %356 {offsets = [2, 0], sizes = [1, 4], strides = [1, 1]} : vector<4x4xf32> to vector<1x4xf32>
    %366 = vector.broadcast %365 : vector<1x4xf32> to vector<4x4xf32>
    %367 = arith.mulf %21, %366 : vector<4x4xf32>
    %368 = arith.addf %364, %367 : vector<4x4xf32>
    %369 = vector.extract_strided_slice %356 {offsets = [3, 0], sizes = [1, 4], strides = [1, 1]} : vector<4x4xf32> to vector<1x4xf32>
    %370 = vector.broadcast %369 : vector<1x4xf32> to vector<4x4xf32>
    %371 = arith.mulf %24, %370 : vector<4x4xf32>
    %372 = arith.addf %368, %371 : vector<4x4xf32>
    %373 = math.tanh %372 : vector<4x4xf32>
    %374 = vector.extract_strided_slice %373 {offsets = [0, 0], sizes = [1, 4], strides = [1, 1]} : vector<4x4xf32> to vector<1x4xf32>
    %375 = vector.broadcast %374 : vector<1x4xf32> to vector<17x4xf32>
    %376 = arith.mulf %27, %375 : vector<17x4xf32>
    %377 = arith.addf %39, %376 : vector<17x4xf32>
    %378 = vector.extract_strided_slice %373 {offsets = [1, 0], sizes = [1, 4], strides = [1, 1]} : vector<4x4xf32> to vector<1x4xf32>
    %379 = vector.broadcast %378 : vector<1x4xf32> to vector<17x4xf32>
    %380 = arith.mulf %30, %379 : vector<17x4xf32>
    %381 = arith.addf %377, %380 : vector<17x4xf32>
    %382 = vector.extract_strided_slice %373 {offsets = [2, 0], sizes = [1, 4], strides = [1, 1]} : vector<4x4xf32> to vector<1x4xf32>
    %383 = vector.broadcast %382 : vector<1x4xf32> to vector<17x4xf32>
    %384 = arith.mulf %33, %383 : vector<17x4xf32>
    %385 = arith.addf %381, %384 : vector<17x4xf32>
    %386 = vector.extract_strided_slice %373 {offsets = [3, 0], sizes = [1, 4], strides = [1, 1]} : vector<4x4xf32> to vector<1x4xf32>
    %387 = vector.broadcast %386 : vector<1x4xf32> to vector<17x4xf32>
    %388 = arith.mulf %36, %387 : vector<17x4xf32>
    %389 = arith.addf %385, %388 : vector<17x4xf32>
    %390 = vector.extract_strided_slice %389 {offsets = [0, 0], sizes = [14, 4], strides = [1, 1]} : vector<17x4xf32> to vector<14x4xf32>
    %391 = arith.subf %2, %390 : vector<14x4xf32>
    %c0_16 = arith.constant 0 : index
    %c12 = arith.constant 12 : index
    %392 = vector.load %arg1[%c0_16, %c12] : memref<17x26xf32, #tpu.memory_space<vmem>>, vector<5x1xf32>
    %393 = vector.shape_cast %392 : vector<5x1xf32> to vector<5x1xf32>
    %394 = vector.broadcast %393 : vector<5x1xf32> to vector<5x4xf32>
    %c0_17 = arith.constant 0 : index
    %c13 = arith.constant 13 : index
    %395 = vector.load %arg1[%c0_17, %c13] : memref<17x26xf32, #tpu.memory_space<vmem>>, vector<5x1xf32>
    %396 = vector.shape_cast %395 : vector<5x1xf32> to vector<5x1xf32>
    %397 = vector.broadcast %396 : vector<5x1xf32> to vector<5x4xf32>
    %c0_18 = arith.constant 0 : index
    %c14 = arith.constant 14 : index
    %398 = vector.load %arg1[%c0_18, %c14] : memref<17x26xf32, #tpu.memory_space<vmem>>, vector<5x1xf32>
    %399 = vector.shape_cast %398 : vector<5x1xf32> to vector<5x1xf32>
    %400 = vector.broadcast %399 : vector<5x1xf32> to vector<5x4xf32>
    %c0_19 = arith.constant 0 : index
    %c15 = arith.constant 15 : index
    %401 = vector.load %arg1[%c0_19, %c15] : memref<17x26xf32, #tpu.memory_space<vmem>>, vector<5x1xf32>
    %402 = vector.shape_cast %401 : vector<5x1xf32> to vector<5x1xf32>
    %403 = vector.broadcast %402 : vector<5x1xf32> to vector<5x4xf32>
    %c0_20 = arith.constant 0 : index
    %c16 = arith.constant 16 : index
    %404 = vector.load %arg1[%c0_20, %c16] : memref<17x26xf32, #tpu.memory_space<vmem>>, vector<5x1xf32>
    %405 = vector.shape_cast %404 : vector<5x1xf32> to vector<5x1xf32>
    %406 = vector.broadcast %405 : vector<5x1xf32> to vector<5x4xf32>
    %c0_21 = arith.constant 0 : index
    %c17 = arith.constant 17 : index
    %407 = vector.load %arg1[%c0_21, %c17] : memref<17x26xf32, #tpu.memory_space<vmem>>, vector<5x1xf32>
    %408 = vector.shape_cast %407 : vector<5x1xf32> to vector<5x1xf32>
    %409 = vector.broadcast %408 : vector<5x1xf32> to vector<5x4xf32>
    %c0_22 = arith.constant 0 : index
    %c18 = arith.constant 18 : index
    %410 = vector.load %arg1[%c0_22, %c18] : memref<17x26xf32, #tpu.memory_space<vmem>>, vector<5x1xf32>
    %411 = vector.shape_cast %410 : vector<5x1xf32> to vector<5x1xf32>
    %412 = vector.broadcast %411 : vector<5x1xf32> to vector<5x4xf32>
    %c0_23 = arith.constant 0 : index
    %c19 = arith.constant 19 : index
    %413 = vector.load %arg1[%c0_23, %c19] : memref<17x26xf32, #tpu.memory_space<vmem>>, vector<17x1xf32>
    %414 = vector.shape_cast %413 : vector<17x1xf32> to vector<17x1xf32>
    %415 = vector.broadcast %414 : vector<17x1xf32> to vector<17x4xf32>
    %c0_24 = arith.constant 0 : index
    %c20 = arith.constant 20 : index
    %416 = vector.load %arg1[%c0_24, %c20] : memref<17x26xf32, #tpu.memory_space<vmem>>, vector<17x1xf32>
    %417 = vector.shape_cast %416 : vector<17x1xf32> to vector<17x1xf32>
    %418 = vector.broadcast %417 : vector<17x1xf32> to vector<17x4xf32>
    %c0_25 = arith.constant 0 : index
    %c21 = arith.constant 21 : index
    %419 = vector.load %arg1[%c0_25, %c21] : memref<17x26xf32, #tpu.memory_space<vmem>>, vector<17x1xf32>
    %420 = vector.shape_cast %419 : vector<17x1xf32> to vector<17x1xf32>
    %421 = vector.broadcast %420 : vector<17x1xf32> to vector<17x4xf32>
    %c0_26 = arith.constant 0 : index
    %c22 = arith.constant 22 : index
    %422 = vector.load %arg1[%c0_26, %c22] : memref<17x26xf32, #tpu.memory_space<vmem>>, vector<17x1xf32>
    %423 = vector.shape_cast %422 : vector<17x1xf32> to vector<17x1xf32>
    %424 = vector.broadcast %423 : vector<17x1xf32> to vector<17x4xf32>
    %c0_27 = arith.constant 0 : index
    %c23 = arith.constant 23 : index
    %425 = vector.load %arg1[%c0_27, %c23] : memref<17x26xf32, #tpu.memory_space<vmem>>, vector<17x1xf32>
    %426 = vector.shape_cast %425 : vector<17x1xf32> to vector<17x1xf32>
    %427 = vector.broadcast %426 : vector<17x1xf32> to vector<17x4xf32>
    %c0_28 = arith.constant 0 : index
    %c24 = arith.constant 24 : index
    %428 = vector.load %arg1[%c0_28, %c24] : memref<17x26xf32, #tpu.memory_space<vmem>>, vector<17x1xf32>
    %429 = vector.shape_cast %428 : vector<17x1xf32> to vector<17x1xf32>
    %430 = vector.broadcast %429 : vector<17x1xf32> to vector<17x4xf32>
    %431 = vector.extract_strided_slice %391 {offsets = [0, 0], sizes = [1, 4], strides = [1, 1]} : vector<14x4xf32> to vector<1x4xf32>
    %432 = vector.broadcast %431 : vector<1x4xf32> to vector<5x4xf32>
    %433 = arith.mulf %394, %432 : vector<5x4xf32>
    %434 = arith.addf %397, %433 : vector<5x4xf32>
    %435 = vector.extract_strided_slice %391 {offsets = [1, 0], sizes = [1, 4], strides = [1, 1]} : vector<14x4xf32> to vector<1x4xf32>
    %436 = vector.broadcast %435 : vector<1x4xf32> to vector<5x4xf32>
    %437 = arith.mulf %394, %436 : vector<5x4xf32>
    %438 = arith.addf %397, %437 : vector<5x4xf32>
    %439 = vector.extract_strided_slice %391 {offsets = [2, 0], sizes = [1, 4], strides = [1, 1]} : vector<14x4xf32> to vector<1x4xf32>
    %440 = vector.broadcast %439 : vector<1x4xf32> to vector<5x4xf32>
    %441 = arith.mulf %394, %440 : vector<5x4xf32>
    %442 = arith.addf %397, %441 : vector<5x4xf32>
    %443 = vector.extract_strided_slice %391 {offsets = [3, 0], sizes = [1, 4], strides = [1, 1]} : vector<14x4xf32> to vector<1x4xf32>
    %444 = vector.broadcast %443 : vector<1x4xf32> to vector<5x4xf32>
    %445 = arith.mulf %394, %444 : vector<5x4xf32>
    %446 = arith.addf %397, %445 : vector<5x4xf32>
    %447 = vector.extract_strided_slice %391 {offsets = [4, 0], sizes = [1, 4], strides = [1, 1]} : vector<14x4xf32> to vector<1x4xf32>
    %448 = vector.broadcast %447 : vector<1x4xf32> to vector<5x4xf32>
    %449 = arith.mulf %394, %448 : vector<5x4xf32>
    %450 = arith.addf %397, %449 : vector<5x4xf32>
    %451 = vector.extract_strided_slice %391 {offsets = [5, 0], sizes = [1, 4], strides = [1, 1]} : vector<14x4xf32> to vector<1x4xf32>
    %452 = vector.broadcast %451 : vector<1x4xf32> to vector<5x4xf32>
    %453 = arith.mulf %394, %452 : vector<5x4xf32>
    %454 = arith.addf %397, %453 : vector<5x4xf32>
    %455 = vector.extract_strided_slice %391 {offsets = [6, 0], sizes = [1, 4], strides = [1, 1]} : vector<14x4xf32> to vector<1x4xf32>
    %456 = vector.broadcast %455 : vector<1x4xf32> to vector<5x4xf32>
    %457 = arith.mulf %394, %456 : vector<5x4xf32>
    %458 = arith.addf %397, %457 : vector<5x4xf32>
    %459 = vector.extract_strided_slice %391 {offsets = [7, 0], sizes = [1, 4], strides = [1, 1]} : vector<14x4xf32> to vector<1x4xf32>
    %460 = vector.broadcast %459 : vector<1x4xf32> to vector<5x4xf32>
    %461 = arith.mulf %394, %460 : vector<5x4xf32>
    %462 = arith.addf %397, %461 : vector<5x4xf32>
    %463 = vector.extract_strided_slice %391 {offsets = [8, 0], sizes = [1, 4], strides = [1, 1]} : vector<14x4xf32> to vector<1x4xf32>
    %464 = vector.broadcast %463 : vector<1x4xf32> to vector<5x4xf32>
    %465 = arith.mulf %394, %464 : vector<5x4xf32>
    %466 = arith.addf %397, %465 : vector<5x4xf32>
    %467 = vector.extract_strided_slice %391 {offsets = [9, 0], sizes = [1, 4], strides = [1, 1]} : vector<14x4xf32> to vector<1x4xf32>
    %468 = vector.broadcast %467 : vector<1x4xf32> to vector<5x4xf32>
    %469 = arith.mulf %394, %468 : vector<5x4xf32>
    %470 = arith.addf %397, %469 : vector<5x4xf32>
    %471 = vector.extract_strided_slice %391 {offsets = [10, 0], sizes = [1, 4], strides = [1, 1]} : vector<14x4xf32> to vector<1x4xf32>
    %472 = vector.broadcast %471 : vector<1x4xf32> to vector<5x4xf32>
    %473 = arith.mulf %394, %472 : vector<5x4xf32>
    %474 = arith.addf %397, %473 : vector<5x4xf32>
    %475 = vector.extract_strided_slice %391 {offsets = [11, 0], sizes = [1, 4], strides = [1, 1]} : vector<14x4xf32> to vector<1x4xf32>
    %476 = vector.broadcast %475 : vector<1x4xf32> to vector<5x4xf32>
    %477 = arith.mulf %394, %476 : vector<5x4xf32>
    %478 = arith.addf %397, %477 : vector<5x4xf32>
    %479 = vector.extract_strided_slice %391 {offsets = [12, 0], sizes = [1, 4], strides = [1, 1]} : vector<14x4xf32> to vector<1x4xf32>
    %480 = vector.broadcast %479 : vector<1x4xf32> to vector<5x4xf32>
    %481 = arith.mulf %394, %480 : vector<5x4xf32>
    %482 = arith.addf %397, %481 : vector<5x4xf32>
    %483 = vector.extract_strided_slice %391 {offsets = [13, 0], sizes = [1, 4], strides = [1, 1]} : vector<14x4xf32> to vector<1x4xf32>
    %484 = vector.broadcast %483 : vector<1x4xf32> to vector<5x4xf32>
    %485 = arith.mulf %394, %484 : vector<5x4xf32>
    %486 = arith.addf %397, %485 : vector<5x4xf32>
    %487 = math.tanh %434 : vector<5x4xf32>
    %488 = vector.extract_strided_slice %487 {offsets = [0, 0], sizes = [1, 4], strides = [1, 1]} : vector<5x4xf32> to vector<1x4xf32>
    %489 = vector.broadcast %488 : vector<1x4xf32> to vector<5x4xf32>
    %490 = arith.mulf %400, %489 : vector<5x4xf32>
    %491 = arith.addf %438, %490 : vector<5x4xf32>
    %492 = vector.extract_strided_slice %487 {offsets = [1, 0], sizes = [1, 4], strides = [1, 1]} : vector<5x4xf32> to vector<1x4xf32>
    %493 = vector.broadcast %492 : vector<1x4xf32> to vector<5x4xf32>
    %494 = arith.mulf %403, %493 : vector<5x4xf32>
    %495 = arith.addf %491, %494 : vector<5x4xf32>
    %496 = vector.extract_strided_slice %487 {offsets = [2, 0], sizes = [1, 4], strides = [1, 1]} : vector<5x4xf32> to vector<1x4xf32>
    %497 = vector.broadcast %496 : vector<1x4xf32> to vector<5x4xf32>
    %498 = arith.mulf %406, %497 : vector<5x4xf32>
    %499 = arith.addf %495, %498 : vector<5x4xf32>
    %500 = vector.extract_strided_slice %487 {offsets = [3, 0], sizes = [1, 4], strides = [1, 1]} : vector<5x4xf32> to vector<1x4xf32>
    %501 = vector.broadcast %500 : vector<1x4xf32> to vector<5x4xf32>
    %502 = arith.mulf %409, %501 : vector<5x4xf32>
    %503 = arith.addf %499, %502 : vector<5x4xf32>
    %504 = vector.extract_strided_slice %487 {offsets = [4, 0], sizes = [1, 4], strides = [1, 1]} : vector<5x4xf32> to vector<1x4xf32>
    %505 = vector.broadcast %504 : vector<1x4xf32> to vector<5x4xf32>
    %506 = arith.mulf %412, %505 : vector<5x4xf32>
    %507 = arith.addf %503, %506 : vector<5x4xf32>
    %508 = math.tanh %507 : vector<5x4xf32>
    %509 = vector.extract_strided_slice %508 {offsets = [0, 0], sizes = [1, 4], strides = [1, 1]} : vector<5x4xf32> to vector<1x4xf32>
    %510 = vector.broadcast %509 : vector<1x4xf32> to vector<5x4xf32>
    %511 = arith.mulf %400, %510 : vector<5x4xf32>
    %512 = arith.addf %442, %511 : vector<5x4xf32>
    %513 = vector.extract_strided_slice %508 {offsets = [1, 0], sizes = [1, 4], strides = [1, 1]} : vector<5x4xf32> to vector<1x4xf32>
    %514 = vector.broadcast %513 : vector<1x4xf32> to vector<5x4xf32>
    %515 = arith.mulf %403, %514 : vector<5x4xf32>
    %516 = arith.addf %512, %515 : vector<5x4xf32>
    %517 = vector.extract_strided_slice %508 {offsets = [2, 0], sizes = [1, 4], strides = [1, 1]} : vector<5x4xf32> to vector<1x4xf32>
    %518 = vector.broadcast %517 : vector<1x4xf32> to vector<5x4xf32>
    %519 = arith.mulf %406, %518 : vector<5x4xf32>
    %520 = arith.addf %516, %519 : vector<5x4xf32>
    %521 = vector.extract_strided_slice %508 {offsets = [3, 0], sizes = [1, 4], strides = [1, 1]} : vector<5x4xf32> to vector<1x4xf32>
    %522 = vector.broadcast %521 : vector<1x4xf32> to vector<5x4xf32>
    %523 = arith.mulf %409, %522 : vector<5x4xf32>
    %524 = arith.addf %520, %523 : vector<5x4xf32>
    %525 = vector.extract_strided_slice %508 {offsets = [4, 0], sizes = [1, 4], strides = [1, 1]} : vector<5x4xf32> to vector<1x4xf32>
    %526 = vector.broadcast %525 : vector<1x4xf32> to vector<5x4xf32>
    %527 = arith.mulf %412, %526 : vector<5x4xf32>
    %528 = arith.addf %524, %527 : vector<5x4xf32>
    %529 = math.tanh %528 : vector<5x4xf32>
    %530 = vector.extract_strided_slice %529 {offsets = [0, 0], sizes = [1, 4], strides = [1, 1]} : vector<5x4xf32> to vector<1x4xf32>
    %531 = vector.broadcast %530 : vector<1x4xf32> to vector<5x4xf32>
    %532 = arith.mulf %400, %531 : vector<5x4xf32>
    %533 = arith.addf %446, %532 : vector<5x4xf32>
    %534 = vector.extract_strided_slice %529 {offsets = [1, 0], sizes = [1, 4], strides = [1, 1]} : vector<5x4xf32> to vector<1x4xf32>
    %535 = vector.broadcast %534 : vector<1x4xf32> to vector<5x4xf32>
    %536 = arith.mulf %403, %535 : vector<5x4xf32>
    %537 = arith.addf %533, %536 : vector<5x4xf32>
    %538 = vector.extract_strided_slice %529 {offsets = [2, 0], sizes = [1, 4], strides = [1, 1]} : vector<5x4xf32> to vector<1x4xf32>
    %539 = vector.broadcast %538 : vector<1x4xf32> to vector<5x4xf32>
    %540 = arith.mulf %406, %539 : vector<5x4xf32>
    %541 = arith.addf %537, %540 : vector<5x4xf32>
    %542 = vector.extract_strided_slice %529 {offsets = [3, 0], sizes = [1, 4], strides = [1, 1]} : vector<5x4xf32> to vector<1x4xf32>
    %543 = vector.broadcast %542 : vector<1x4xf32> to vector<5x4xf32>
    %544 = arith.mulf %409, %543 : vector<5x4xf32>
    %545 = arith.addf %541, %544 : vector<5x4xf32>
    %546 = vector.extract_strided_slice %529 {offsets = [4, 0], sizes = [1, 4], strides = [1, 1]} : vector<5x4xf32> to vector<1x4xf32>
    %547 = vector.broadcast %546 : vector<1x4xf32> to vector<5x4xf32>
    %548 = arith.mulf %412, %547 : vector<5x4xf32>
    %549 = arith.addf %545, %548 : vector<5x4xf32>
    %550 = math.tanh %549 : vector<5x4xf32>
    %551 = vector.extract_strided_slice %550 {offsets = [0, 0], sizes = [1, 4], strides = [1, 1]} : vector<5x4xf32> to vector<1x4xf32>
    %552 = vector.broadcast %551 : vector<1x4xf32> to vector<5x4xf32>
    %553 = arith.mulf %400, %552 : vector<5x4xf32>
    %554 = arith.addf %450, %553 : vector<5x4xf32>
    %555 = vector.extract_strided_slice %550 {offsets = [1, 0], sizes = [1, 4], strides = [1, 1]} : vector<5x4xf32> to vector<1x4xf32>
    %556 = vector.broadcast %555 : vector<1x4xf32> to vector<5x4xf32>
    %557 = arith.mulf %403, %556 : vector<5x4xf32>
    %558 = arith.addf %554, %557 : vector<5x4xf32>
    %559 = vector.extract_strided_slice %550 {offsets = [2, 0], sizes = [1, 4], strides = [1, 1]} : vector<5x4xf32> to vector<1x4xf32>
    %560 = vector.broadcast %559 : vector<1x4xf32> to vector<5x4xf32>
    %561 = arith.mulf %406, %560 : vector<5x4xf32>
    %562 = arith.addf %558, %561 : vector<5x4xf32>
    %563 = vector.extract_strided_slice %550 {offsets = [3, 0], sizes = [1, 4], strides = [1, 1]} : vector<5x4xf32> to vector<1x4xf32>
    %564 = vector.broadcast %563 : vector<1x4xf32> to vector<5x4xf32>
    %565 = arith.mulf %409, %564 : vector<5x4xf32>
    %566 = arith.addf %562, %565 : vector<5x4xf32>
    %567 = vector.extract_strided_slice %550 {offsets = [4, 0], sizes = [1, 4], strides = [1, 1]} : vector<5x4xf32> to vector<1x4xf32>
    %568 = vector.broadcast %567 : vector<1x4xf32> to vector<5x4xf32>
    %569 = arith.mulf %412, %568 : vector<5x4xf32>
    %570 = arith.addf %566, %569 : vector<5x4xf32>
    %571 = math.tanh %570 : vector<5x4xf32>
    %572 = vector.extract_strided_slice %571 {offsets = [0, 0], sizes = [1, 4], strides = [1, 1]} : vector<5x4xf32> to vector<1x4xf32>
    %573 = vector.broadcast %572 : vector<1x4xf32> to vector<5x4xf32>
    %574 = arith.mulf %400, %573 : vector<5x4xf32>
    %575 = arith.addf %454, %574 : vector<5x4xf32>
    %576 = vector.extract_strided_slice %571 {offsets = [1, 0], sizes = [1, 4], strides = [1, 1]} : vector<5x4xf32> to vector<1x4xf32>
    %577 = vector.broadcast %576 : vector<1x4xf32> to vector<5x4xf32>
    %578 = arith.mulf %403, %577 : vector<5x4xf32>
    %579 = arith.addf %575, %578 : vector<5x4xf32>
    %580 = vector.extract_strided_slice %571 {offsets = [2, 0], sizes = [1, 4], strides = [1, 1]} : vector<5x4xf32> to vector<1x4xf32>
    %581 = vector.broadcast %580 : vector<1x4xf32> to vector<5x4xf32>
    %582 = arith.mulf %406, %581 : vector<5x4xf32>
    %583 = arith.addf %579, %582 : vector<5x4xf32>
    %584 = vector.extract_strided_slice %571 {offsets = [3, 0], sizes = [1, 4], strides = [1, 1]} : vector<5x4xf32> to vector<1x4xf32>
    %585 = vector.broadcast %584 : vector<1x4xf32> to vector<5x4xf32>
    %586 = arith.mulf %409, %585 : vector<5x4xf32>
    %587 = arith.addf %583, %586 : vector<5x4xf32>
    %588 = vector.extract_strided_slice %571 {offsets = [4, 0], sizes = [1, 4], strides = [1, 1]} : vector<5x4xf32> to vector<1x4xf32>
    %589 = vector.broadcast %588 : vector<1x4xf32> to vector<5x4xf32>
    %590 = arith.mulf %412, %589 : vector<5x4xf32>
    %591 = arith.addf %587, %590 : vector<5x4xf32>
    %592 = math.tanh %591 : vector<5x4xf32>
    %593 = vector.extract_strided_slice %592 {offsets = [0, 0], sizes = [1, 4], strides = [1, 1]} : vector<5x4xf32> to vector<1x4xf32>
    %594 = vector.broadcast %593 : vector<1x4xf32> to vector<5x4xf32>
    %595 = arith.mulf %400, %594 : vector<5x4xf32>
    %596 = arith.addf %458, %595 : vector<5x4xf32>
    %597 = vector.extract_strided_slice %592 {offsets = [1, 0], sizes = [1, 4], strides = [1, 1]} : vector<5x4xf32> to vector<1x4xf32>
    %598 = vector.broadcast %597 : vector<1x4xf32> to vector<5x4xf32>
    %599 = arith.mulf %403, %598 : vector<5x4xf32>
    %600 = arith.addf %596, %599 : vector<5x4xf32>
    %601 = vector.extract_strided_slice %592 {offsets = [2, 0], sizes = [1, 4], strides = [1, 1]} : vector<5x4xf32> to vector<1x4xf32>
    %602 = vector.broadcast %601 : vector<1x4xf32> to vector<5x4xf32>
    %603 = arith.mulf %406, %602 : vector<5x4xf32>
    %604 = arith.addf %600, %603 : vector<5x4xf32>
    %605 = vector.extract_strided_slice %592 {offsets = [3, 0], sizes = [1, 4], strides = [1, 1]} : vector<5x4xf32> to vector<1x4xf32>
    %606 = vector.broadcast %605 : vector<1x4xf32> to vector<5x4xf32>
    %607 = arith.mulf %409, %606 : vector<5x4xf32>
    %608 = arith.addf %604, %607 : vector<5x4xf32>
    %609 = vector.extract_strided_slice %592 {offsets = [4, 0], sizes = [1, 4], strides = [1, 1]} : vector<5x4xf32> to vector<1x4xf32>
    %610 = vector.broadcast %609 : vector<1x4xf32> to vector<5x4xf32>
    %611 = arith.mulf %412, %610 : vector<5x4xf32>
    %612 = arith.addf %608, %611 : vector<5x4xf32>
    %613 = math.tanh %612 : vector<5x4xf32>
    %614 = vector.extract_strided_slice %613 {offsets = [0, 0], sizes = [1, 4], strides = [1, 1]} : vector<5x4xf32> to vector<1x4xf32>
    %615 = vector.broadcast %614 : vector<1x4xf32> to vector<5x4xf32>
    %616 = arith.mulf %400, %615 : vector<5x4xf32>
    %617 = arith.addf %462, %616 : vector<5x4xf32>
    %618 = vector.extract_strided_slice %613 {offsets = [1, 0], sizes = [1, 4], strides = [1, 1]} : vector<5x4xf32> to vector<1x4xf32>
    %619 = vector.broadcast %618 : vector<1x4xf32> to vector<5x4xf32>
    %620 = arith.mulf %403, %619 : vector<5x4xf32>
    %621 = arith.addf %617, %620 : vector<5x4xf32>
    %622 = vector.extract_strided_slice %613 {offsets = [2, 0], sizes = [1, 4], strides = [1, 1]} : vector<5x4xf32> to vector<1x4xf32>
    %623 = vector.broadcast %622 : vector<1x4xf32> to vector<5x4xf32>
    %624 = arith.mulf %406, %623 : vector<5x4xf32>
    %625 = arith.addf %621, %624 : vector<5x4xf32>
    %626 = vector.extract_strided_slice %613 {offsets = [3, 0], sizes = [1, 4], strides = [1, 1]} : vector<5x4xf32> to vector<1x4xf32>
    %627 = vector.broadcast %626 : vector<1x4xf32> to vector<5x4xf32>
    %628 = arith.mulf %409, %627 : vector<5x4xf32>
    %629 = arith.addf %625, %628 : vector<5x4xf32>
    %630 = vector.extract_strided_slice %613 {offsets = [4, 0], sizes = [1, 4], strides = [1, 1]} : vector<5x4xf32> to vector<1x4xf32>
    %631 = vector.broadcast %630 : vector<1x4xf32> to vector<5x4xf32>
    %632 = arith.mulf %412, %631 : vector<5x4xf32>
    %633 = arith.addf %629, %632 : vector<5x4xf32>
    %634 = math.tanh %633 : vector<5x4xf32>
    %635 = vector.extract_strided_slice %634 {offsets = [0, 0], sizes = [1, 4], strides = [1, 1]} : vector<5x4xf32> to vector<1x4xf32>
    %636 = vector.broadcast %635 : vector<1x4xf32> to vector<5x4xf32>
    %637 = arith.mulf %400, %636 : vector<5x4xf32>
    %638 = arith.addf %466, %637 : vector<5x4xf32>
    %639 = vector.extract_strided_slice %634 {offsets = [1, 0], sizes = [1, 4], strides = [1, 1]} : vector<5x4xf32> to vector<1x4xf32>
    %640 = vector.broadcast %639 : vector<1x4xf32> to vector<5x4xf32>
    %641 = arith.mulf %403, %640 : vector<5x4xf32>
    %642 = arith.addf %638, %641 : vector<5x4xf32>
    %643 = vector.extract_strided_slice %634 {offsets = [2, 0], sizes = [1, 4], strides = [1, 1]} : vector<5x4xf32> to vector<1x4xf32>
    %644 = vector.broadcast %643 : vector<1x4xf32> to vector<5x4xf32>
    %645 = arith.mulf %406, %644 : vector<5x4xf32>
    %646 = arith.addf %642, %645 : vector<5x4xf32>
    %647 = vector.extract_strided_slice %634 {offsets = [3, 0], sizes = [1, 4], strides = [1, 1]} : vector<5x4xf32> to vector<1x4xf32>
    %648 = vector.broadcast %647 : vector<1x4xf32> to vector<5x4xf32>
    %649 = arith.mulf %409, %648 : vector<5x4xf32>
    %650 = arith.addf %646, %649 : vector<5x4xf32>
    %651 = vector.extract_strided_slice %634 {offsets = [4, 0], sizes = [1, 4], strides = [1, 1]} : vector<5x4xf32> to vector<1x4xf32>
    %652 = vector.broadcast %651 : vector<1x4xf32> to vector<5x4xf32>
    %653 = arith.mulf %412, %652 : vector<5x4xf32>
    %654 = arith.addf %650, %653 : vector<5x4xf32>
    %655 = math.tanh %654 : vector<5x4xf32>
    %656 = vector.extract_strided_slice %655 {offsets = [0, 0], sizes = [1, 4], strides = [1, 1]} : vector<5x4xf32> to vector<1x4xf32>
    %657 = vector.broadcast %656 : vector<1x4xf32> to vector<5x4xf32>
    %658 = arith.mulf %400, %657 : vector<5x4xf32>
    %659 = arith.addf %470, %658 : vector<5x4xf32>
    %660 = vector.extract_strided_slice %655 {offsets = [1, 0], sizes = [1, 4], strides = [1, 1]} : vector<5x4xf32> to vector<1x4xf32>
    %661 = vector.broadcast %660 : vector<1x4xf32> to vector<5x4xf32>
    %662 = arith.mulf %403, %661 : vector<5x4xf32>
    %663 = arith.addf %659, %662 : vector<5x4xf32>
    %664 = vector.extract_strided_slice %655 {offsets = [2, 0], sizes = [1, 4], strides = [1, 1]} : vector<5x4xf32> to vector<1x4xf32>
    %665 = vector.broadcast %664 : vector<1x4xf32> to vector<5x4xf32>
    %666 = arith.mulf %406, %665 : vector<5x4xf32>
    %667 = arith.addf %663, %666 : vector<5x4xf32>
    %668 = vector.extract_strided_slice %655 {offsets = [3, 0], sizes = [1, 4], strides = [1, 1]} : vector<5x4xf32> to vector<1x4xf32>
    %669 = vector.broadcast %668 : vector<1x4xf32> to vector<5x4xf32>
    %670 = arith.mulf %409, %669 : vector<5x4xf32>
    %671 = arith.addf %667, %670 : vector<5x4xf32>
    %672 = vector.extract_strided_slice %655 {offsets = [4, 0], sizes = [1, 4], strides = [1, 1]} : vector<5x4xf32> to vector<1x4xf32>
    %673 = vector.broadcast %672 : vector<1x4xf32> to vector<5x4xf32>
    %674 = arith.mulf %412, %673 : vector<5x4xf32>
    %675 = arith.addf %671, %674 : vector<5x4xf32>
    %676 = math.tanh %675 : vector<5x4xf32>
    %677 = vector.extract_strided_slice %676 {offsets = [0, 0], sizes = [1, 4], strides = [1, 1]} : vector<5x4xf32> to vector<1x4xf32>
    %678 = vector.broadcast %677 : vector<1x4xf32> to vector<5x4xf32>
    %679 = arith.mulf %400, %678 : vector<5x4xf32>
    %680 = arith.addf %474, %679 : vector<5x4xf32>
    %681 = vector.extract_strided_slice %676 {offsets = [1, 0], sizes = [1, 4], strides = [1, 1]} : vector<5x4xf32> to vector<1x4xf32>
    %682 = vector.broadcast %681 : vector<1x4xf32> to vector<5x4xf32>
    %683 = arith.mulf %403, %682 : vector<5x4xf32>
    %684 = arith.addf %680, %683 : vector<5x4xf32>
    %685 = vector.extract_strided_slice %676 {offsets = [2, 0], sizes = [1, 4], strides = [1, 1]} : vector<5x4xf32> to vector<1x4xf32>
    %686 = vector.broadcast %685 : vector<1x4xf32> to vector<5x4xf32>
    %687 = arith.mulf %406, %686 : vector<5x4xf32>
    %688 = arith.addf %684, %687 : vector<5x4xf32>
    %689 = vector.extract_strided_slice %676 {offsets = [3, 0], sizes = [1, 4], strides = [1, 1]} : vector<5x4xf32> to vector<1x4xf32>
    %690 = vector.broadcast %689 : vector<1x4xf32> to vector<5x4xf32>
    %691 = arith.mulf %409, %690 : vector<5x4xf32>
    %692 = arith.addf %688, %691 : vector<5x4xf32>
    %693 = vector.extract_strided_slice %676 {offsets = [4, 0], sizes = [1, 4], strides = [1, 1]} : vector<5x4xf32> to vector<1x4xf32>
    %694 = vector.broadcast %693 : vector<1x4xf32> to vector<5x4xf32>
    %695 = arith.mulf %412, %694 : vector<5x4xf32>
    %696 = arith.addf %692, %695 : vector<5x4xf32>
    %697 = math.tanh %696 : vector<5x4xf32>
    %698 = vector.extract_strided_slice %697 {offsets = [0, 0], sizes = [1, 4], strides = [1, 1]} : vector<5x4xf32> to vector<1x4xf32>
    %699 = vector.broadcast %698 : vector<1x4xf32> to vector<5x4xf32>
    %700 = arith.mulf %400, %699 : vector<5x4xf32>
    %701 = arith.addf %478, %700 : vector<5x4xf32>
    %702 = vector.extract_strided_slice %697 {offsets = [1, 0], sizes = [1, 4], strides = [1, 1]} : vector<5x4xf32> to vector<1x4xf32>
    %703 = vector.broadcast %702 : vector<1x4xf32> to vector<5x4xf32>
    %704 = arith.mulf %403, %703 : vector<5x4xf32>
    %705 = arith.addf %701, %704 : vector<5x4xf32>
    %706 = vector.extract_strided_slice %697 {offsets = [2, 0], sizes = [1, 4], strides = [1, 1]} : vector<5x4xf32> to vector<1x4xf32>
    %707 = vector.broadcast %706 : vector<1x4xf32> to vector<5x4xf32>
    %708 = arith.mulf %406, %707 : vector<5x4xf32>
    %709 = arith.addf %705, %708 : vector<5x4xf32>
    %710 = vector.extract_strided_slice %697 {offsets = [3, 0], sizes = [1, 4], strides = [1, 1]} : vector<5x4xf32> to vector<1x4xf32>
    %711 = vector.broadcast %710 : vector<1x4xf32> to vector<5x4xf32>
    %712 = arith.mulf %409, %711 : vector<5x4xf32>
    %713 = arith.addf %709, %712 : vector<5x4xf32>
    %714 = vector.extract_strided_slice %697 {offsets = [4, 0], sizes = [1, 4], strides = [1, 1]} : vector<5x4xf32> to vector<1x4xf32>
    %715 = vector.broadcast %714 : vector<1x4xf32> to vector<5x4xf32>
    %716 = arith.mulf %412, %715 : vector<5x4xf32>
    %717 = arith.addf %713, %716 : vector<5x4xf32>
    %718 = math.tanh %717 : vector<5x4xf32>
    %719 = vector.extract_strided_slice %718 {offsets = [0, 0], sizes = [1, 4], strides = [1, 1]} : vector<5x4xf32> to vector<1x4xf32>
    %720 = vector.broadcast %719 : vector<1x4xf32> to vector<5x4xf32>
    %721 = arith.mulf %400, %720 : vector<5x4xf32>
    %722 = arith.addf %482, %721 : vector<5x4xf32>
    %723 = vector.extract_strided_slice %718 {offsets = [1, 0], sizes = [1, 4], strides = [1, 1]} : vector<5x4xf32> to vector<1x4xf32>
    %724 = vector.broadcast %723 : vector<1x4xf32> to vector<5x4xf32>
    %725 = arith.mulf %403, %724 : vector<5x4xf32>
    %726 = arith.addf %722, %725 : vector<5x4xf32>
    %727 = vector.extract_strided_slice %718 {offsets = [2, 0], sizes = [1, 4], strides = [1, 1]} : vector<5x4xf32> to vector<1x4xf32>
    %728 = vector.broadcast %727 : vector<1x4xf32> to vector<5x4xf32>
    %729 = arith.mulf %406, %728 : vector<5x4xf32>
    %730 = arith.addf %726, %729 : vector<5x4xf32>
    %731 = vector.extract_strided_slice %718 {offsets = [3, 0], sizes = [1, 4], strides = [1, 1]} : vector<5x4xf32> to vector<1x4xf32>
    %732 = vector.broadcast %731 : vector<1x4xf32> to vector<5x4xf32>
    %733 = arith.mulf %409, %732 : vector<5x4xf32>
    %734 = arith.addf %730, %733 : vector<5x4xf32>
    %735 = vector.extract_strided_slice %718 {offsets = [4, 0], sizes = [1, 4], strides = [1, 1]} : vector<5x4xf32> to vector<1x4xf32>
    %736 = vector.broadcast %735 : vector<1x4xf32> to vector<5x4xf32>
    %737 = arith.mulf %412, %736 : vector<5x4xf32>
    %738 = arith.addf %734, %737 : vector<5x4xf32>
    %739 = math.tanh %738 : vector<5x4xf32>
    %740 = vector.extract_strided_slice %739 {offsets = [0, 0], sizes = [1, 4], strides = [1, 1]} : vector<5x4xf32> to vector<1x4xf32>
    %741 = vector.broadcast %740 : vector<1x4xf32> to vector<5x4xf32>
    %742 = arith.mulf %400, %741 : vector<5x4xf32>
    %743 = arith.addf %486, %742 : vector<5x4xf32>
    %744 = vector.extract_strided_slice %739 {offsets = [1, 0], sizes = [1, 4], strides = [1, 1]} : vector<5x4xf32> to vector<1x4xf32>
    %745 = vector.broadcast %744 : vector<1x4xf32> to vector<5x4xf32>
    %746 = arith.mulf %403, %745 : vector<5x4xf32>
    %747 = arith.addf %743, %746 : vector<5x4xf32>
    %748 = vector.extract_strided_slice %739 {offsets = [2, 0], sizes = [1, 4], strides = [1, 1]} : vector<5x4xf32> to vector<1x4xf32>
    %749 = vector.broadcast %748 : vector<1x4xf32> to vector<5x4xf32>
    %750 = arith.mulf %406, %749 : vector<5x4xf32>
    %751 = arith.addf %747, %750 : vector<5x4xf32>
    %752 = vector.extract_strided_slice %739 {offsets = [3, 0], sizes = [1, 4], strides = [1, 1]} : vector<5x4xf32> to vector<1x4xf32>
    %753 = vector.broadcast %752 : vector<1x4xf32> to vector<5x4xf32>
    %754 = arith.mulf %409, %753 : vector<5x4xf32>
    %755 = arith.addf %751, %754 : vector<5x4xf32>
    %756 = vector.extract_strided_slice %739 {offsets = [4, 0], sizes = [1, 4], strides = [1, 1]} : vector<5x4xf32> to vector<1x4xf32>
    %757 = vector.broadcast %756 : vector<1x4xf32> to vector<5x4xf32>
    %758 = arith.mulf %412, %757 : vector<5x4xf32>
    %759 = arith.addf %755, %758 : vector<5x4xf32>
    %760 = math.tanh %759 : vector<5x4xf32>
    %761 = vector.extract_strided_slice %760 {offsets = [0, 0], sizes = [1, 4], strides = [1, 1]} : vector<5x4xf32> to vector<1x4xf32>
    %762 = vector.broadcast %761 : vector<1x4xf32> to vector<17x4xf32>
    %763 = arith.mulf %415, %762 : vector<17x4xf32>
    %764 = arith.addf %430, %763 : vector<17x4xf32>
    %765 = vector.extract_strided_slice %760 {offsets = [1, 0], sizes = [1, 4], strides = [1, 1]} : vector<5x4xf32> to vector<1x4xf32>
    %766 = vector.broadcast %765 : vector<1x4xf32> to vector<17x4xf32>
    %767 = arith.mulf %418, %766 : vector<17x4xf32>
    %768 = arith.addf %764, %767 : vector<17x4xf32>
    %769 = vector.extract_strided_slice %760 {offsets = [2, 0], sizes = [1, 4], strides = [1, 1]} : vector<5x4xf32> to vector<1x4xf32>
    %770 = vector.broadcast %769 : vector<1x4xf32> to vector<17x4xf32>
    %771 = arith.mulf %421, %770 : vector<17x4xf32>
    %772 = arith.addf %768, %771 : vector<17x4xf32>
    %773 = vector.extract_strided_slice %760 {offsets = [3, 0], sizes = [1, 4], strides = [1, 1]} : vector<5x4xf32> to vector<1x4xf32>
    %774 = vector.broadcast %773 : vector<1x4xf32> to vector<17x4xf32>
    %775 = arith.mulf %424, %774 : vector<17x4xf32>
    %776 = arith.addf %772, %775 : vector<17x4xf32>
    %777 = vector.extract_strided_slice %760 {offsets = [4, 0], sizes = [1, 4], strides = [1, 1]} : vector<5x4xf32> to vector<1x4xf32>
    %778 = vector.broadcast %777 : vector<1x4xf32> to vector<17x4xf32>
    %779 = arith.mulf %427, %778 : vector<17x4xf32>
    %780 = arith.addf %776, %779 : vector<17x4xf32>
    %c0_29 = arith.constant 0 : index
    %c25 = arith.constant 25 : index
    %781 = vector.load %arg1[%c0_29, %c25] : memref<17x26xf32, #tpu.memory_space<vmem>>, vector<17x1xf32>
    %782 = vector.shape_cast %781 : vector<17x1xf32> to vector<17x1xf32>
    %783 = vector.broadcast %782 : vector<17x1xf32> to vector<17x4xf32>
    %784 = arith.addf %389, %780 : vector<17x4xf32>
    %785 = arith.mulf %783, %784 : vector<17x4xf32>
    %786 = arith.addf %0, %785 : vector<17x4xf32>
    %c0_30 = arith.constant 0 : index
    %c0_31 = arith.constant 0 : index
    %787 = vector.load %arg2[%c0_30, %c0_31] : memref<17x4xf32, #tpu.memory_space<vmem>>, vector<17x4xf32>
    tpu.vector_store %arg2[%c0_30, %c0_31], %786 {strides = array<i32>} : memref<17x4xf32, #tpu.memory_space<vmem>>, vector<17x4xf32>,
    return
  }
}

</mosaic_0001>

<llo_original>
// kernel: forward.1
$region0: #{forward.1}
  #allocation0 [shape = 'u32[]', space=smem, size = 0x4, offset = 0x4, fixed_abs, tag = 'smem constant byte address 0x4 - core index']
  #allocation1 [shape = 'u32[144,128]{1,0:T(1,128)}', space=vmem, size = 0x12000, scoped, tag = 'internal scratch']
  %s0 = inlined_call_operand.vmem [shape: f32[17,8], index: 0, kind: input, shape index: {}]
  %s1 = inlined_call_operand.vmem [shape: f32[17,26], index: 1, kind: input, shape index: {}]
  %s2 = inlined_call_operand.vmem [shape: f32[17,4], index: 2, kind: output, shape index: {}]
  %s3 = sld [smem:[#allocation0]]
  $region18: #{forward.1} parent=0
    _
  %s5 = ssub.s32 1, %s3
  %s6 = scalar_select 0, %s5, %s3
  // Predicated region
  $region2: #{forward.1} parent=0 // pred_check
    _
  $region3: #{forward.1} parent=0 // pred_check_branch
    %8 = sbr.rel (0) target = $region5
  $region4: #{forward.1} parent=0 // pred_region
    _
  $region5: #{forward.1} parent=0 // pred_fallthru
    _
  // Predicated region
  $region6: #{forward.1} parent=0 // pred_check
    _
  $region7: #{forward.1} parent=0 // pred_check_branch
    %10 = sbr.rel (0) target = $region9
  $region8: #{forward.1} parent=0 // pred_region
    _
  $region9: #{forward.1} parent=0 // pred_fallthru
    _
  %v11 = vld [vmem:[%s0] sm:$0xff]
  %v12 = vld [vmem:[%s0 + $0x8] sm:$0xff]
  %v13 = vld [vmem:[%s0 + $0x10] sm:$0x1]
  %v14 = vld [vmem:[%s1] sm:$0xf]
  %16 = vset.pattern.permute.xlu0 0
  %17 = vperm.xlu0 %16, %v14
  %v18 = vpop.permute.xlu0 %17
  %20 = vset.pattern.permute.xlu0 1
  %21 = vperm.xlu0 %20, %v14
  %v22 = vpop.permute.xlu0 %21
  %24 = vset.pattern.permute.xlu0 2
  %25 = vperm.xlu0 %24, %v14
  %v26 = vpop.permute.xlu0 %25
  %28 = vset.pattern.permute.xlu0 3
  %29 = vperm.xlu0 %28, %v14
  %v30 = vpop.permute.xlu0 %29
  %32 = vset.pattern.permute.xlu0 4
  %33 = vperm.xlu0 %32, %v14
  %v34 = vpop.permute.xlu0 %33
  %36 = vset.pattern.permute.xlu0 5
  %37 = vperm.xlu0 %36, %v14
  %v38 = vpop.permute.xlu0 %37
  %40 = vset.pattern.permute.xlu0 6
  %41 = vperm.xlu0 %40, %v14
  %v42 = vpop.permute.xlu0 %41
  %v44 = vld [vmem:[%s1] sm:$0xff]
  %v45 = vld [vmem:[%s1 + $0x8] sm:$0xff]
  %v46 = vld [vmem:[%s1 + $0x10] sm:$0x1]
  %48 = vset.pattern.permute.xlu0 7
  %49 = vperm.xlu0 %48, %v44
  %v50 = vpop.permute.xlu0 %49
  %53 = vset.pattern.permute.xlu0 7
  %54 = vperm.xlu0 %53, %v45
  %v55 = vpop.permute.xlu0 %54
  %58 = vset.pattern.permute.xlu0 7
  %59 = vperm.xlu0 %58, %v46
  %v60 = vpop.permute.xlu0 %59
  %62 = vset.pattern.permute.xlu0 8
  %63 = vperm.xlu0 %62, %v44
  %v64 = vpop.permute.xlu0 %63
  %66 = vset.pattern.permute.xlu0 8
  %67 = vperm.xlu0 %66, %v45
  %v68 = vpop.permute.xlu0 %67
  %70 = vset.pattern.permute.xlu0 8
  %71 = vperm.xlu0 %70, %v46
  %v72 = vpop.permute.xlu0 %71
  %74 = vset.pattern.permute.xlu0 9
  %75 = vperm.xlu0 %74, %v44
  %v76 = vpop.permute.xlu0 %75
  %78 = vset.pattern.permute.xlu0 9
  %79 = vperm.xlu0 %78, %v45
  %v80 = vpop.permute.xlu0 %79
  %82 = vset.pattern.permute.xlu0 9
  %83 = vperm.xlu0 %82, %v46
  %v84 = vpop.permute.xlu0 %83
  %86 = vset.pattern.permute.xlu0 10
  %87 = vperm.xlu0 %86, %v44
  %v88 = vpop.permute.xlu0 %87
  %90 = vset.pattern.permute.xlu0 10
  %91 = vperm.xlu0 %90, %v45
  %v92 = vpop.permute.xlu0 %91
  %94 = vset.pattern.permute.xlu0 10
  %95 = vperm.xlu0 %94, %v46
  %v96 = vpop.permute.xlu0 %95
  %98 = vset.pattern.permute.xlu0 11
  %99 = vperm.xlu0 %98, %v44
  %v100 = vpop.permute.xlu0 %99
  %102 = vset.pattern.permute.xlu0 11
  %103 = vperm.xlu0 %102, %v45
  %v104 = vpop.permute.xlu0 %103
  %106 = vset.pattern.permute.xlu0 11
  %107 = vperm.xlu0 %106, %v46
  %v108 = vpop.permute.xlu0 %107
  %v110 = vlaneseq
  %v111 = vshrl.u32 %v110, 7
  %v112 = vsub.s32 0, %v111
  %v113 = vrot.slane %v11, %v112
  %v114 = vmul.f32 %v18, %v113
  %v115 = vadd.f32 %v26, %v114
  %v116 = vmul.f32 %v22, %v113
  %118 = vrot.lane.b32.xlu0 %v116, 124
  %v119 = vpop.permute.xlu0 %118
  %v121 = vadd.f32 %v115, %v119
  %v122 = vlaneseq
  %v123 = vshrl.u32 %v122, 7
  %v124 = vsub.s32 1, %v123
  %v125 = vrot.slane %v11, %v124
  %v126 = vmul.f32 %v18, %v125
  %v127 = vadd.f32 %v26, %v126
  %v128 = vmul.f32 %v22, %v125
  %130 = vrot.lane.b32.xlu0 %v128, 124
  %v131 = vpop.permute.xlu0 %130
  %v133 = vadd.f32 %v127, %v131
  %v134 = vlaneseq
  %v135 = vshrl.u32 %v134, 7
  %v136 = vsub.s32 2, %v135
  %v137 = vrot.slane %v11, %v136
  %v138 = vmul.f32 %v18, %v137
  %v139 = vadd.f32 %v26, %v138
  %v140 = vmul.f32 %v22, %v137
  %142 = vrot.lane.b32.xlu0 %v140, 124
  %v143 = vpop.permute.xlu0 %142
  %v145 = vadd.f32 %v139, %v143
  %v146 = vlaneseq
  %v147 = vshrl.u32 %v146, 7
  %v148 = vsub.s32 3, %v147
  %v149 = vrot.slane %v11, %v148
  %v150 = vmul.f32 %v18, %v149
  %v151 = vadd.f32 %v26, %v150
  %v152 = vmul.f32 %v22, %v149
  %154 = vrot.lane.b32.xlu0 %v152, 124
  %v155 = vpop.permute.xlu0 %154
  %v157 = vadd.f32 %v151, %v155
  %v158 = vlaneseq
  %v159 = vshrl.u32 %v158, 7
  %v160 = vsub.s32 4, %v159
  %v161 = vrot.slane %v11, %v160
  %v162 = vmul.f32 %v18, %v161
  %v163 = vadd.f32 %v26, %v162
  %v164 = vmul.f32 %v22, %v161
  %166 = vrot.lane.b32.xlu0 %v164, 124
  %v167 = vpop.permute.xlu0 %166
  %v169 = vadd.f32 %v163, %v167
  %v170 = vlaneseq
  %v171 = vshrl.u32 %v170, 7
  %v172 = vsub.s32 5, %v171
  %v173 = vrot.slane %v11, %v172
  %v174 = vmul.f32 %v18, %v173
  %v175 = vadd.f32 %v26, %v174
  %v176 = vmul.f32 %v22, %v173
  %178 = vrot.lane.b32.xlu0 %v176, 124
  %v179 = vpop.permute.xlu0 %178
  %v181 = vadd.f32 %v175, %v179
  %v182 = vlaneseq
  %v183 = vshrl.u32 %v182, 7
  %v184 = vsub.s32 6, %v183
  %v185 = vrot.slane %v11, %v184
  %v186 = vmul.f32 %v18, %v185
  %v187 = vadd.f32 %v26, %v186
  %v188 = vmul.f32 %v22, %v185
  %190 = vrot.lane.b32.xlu0 %v188, 124
  %v191 = vpop.permute.xlu0 %190
  %v193 = vadd.f32 %v187, %v191
  %v194 = vlaneseq
  %v195 = vshrl.u32 %v194, 7
  %v196 = vsub.s32 7, %v195
  %v197 = vrot.slane %v11, %v196
  %v198 = vmul.f32 %v18, %v197
  %v199 = vadd.f32 %v26, %v198
  %v200 = vmul.f32 %v22, %v197
  %202 = vrot.lane.b32.xlu0 %v200, 124
  %v203 = vpop.permute.xlu0 %202
  %v205 = vadd.f32 %v199, %v203
  %v206 = vlaneseq
  %v207 = vshrl.u32 %v206, 7
  %v208 = vsub.s32 0, %v207
  %v209 = vrot.slane %v12, %v208
  %v210 = vmul.f32 %v18, %v209
  %v211 = vadd.f32 %v26, %v210
  %v212 = vmul.f32 %v22, %v209
  %214 = vrot.lane.b32.xlu0 %v212, 124
  %v215 = vpop.permute.xlu0 %214
  %v217 = vadd.f32 %v211, %v215
  %v218 = vlaneseq
  %v219 = vshrl.u32 %v218, 7
  %v220 = vsub.s32 1, %v219
  %v221 = vrot.slane %v12, %v220
  %v222 = vmul.f32 %v18, %v221
  %v223 = vadd.f32 %v26, %v222
  %v224 = vmul.f32 %v22, %v221
  %226 = vrot.lane.b32.xlu0 %v224, 124
  %v227 = vpop.permute.xlu0 %226
  %v229 = vadd.f32 %v223, %v227
  %v230 = vlaneseq
  %v231 = vshrl.u32 %v230, 7
  %v232 = vsub.s32 2, %v231
  %v233 = vrot.slane %v12, %v232
  %v234 = vmul.f32 %v18, %v233
  %v235 = vadd.f32 %v26, %v234
  %v236 = vmul.f32 %v22, %v233
  %238 = vrot.lane.b32.xlu0 %v236, 124
  %v239 = vpop.permute.xlu0 %238
  %v241 = vadd.f32 %v235, %v239
  %v242 = vlaneseq
  %v243 = vshrl.u32 %v242, 7
  %v244 = vsub.s32 3, %v243
  %v245 = vrot.slane %v12, %v244
  %v246 = vmul.f32 %v18, %v245
  %v247 = vadd.f32 %v26, %v246
  %v248 = vmul.f32 %v22, %v245
  %250 = vrot.lane.b32.xlu0 %v248, 124
  %v251 = vpop.permute.xlu0 %250
  %v253 = vadd.f32 %v247, %v251
  %v254 = vlaneseq
  %v255 = vshrl.u32 %v254, 7
  %v256 = vsub.s32 4, %v255
  %v257 = vrot.slane %v12, %v256
  %v258 = vmul.f32 %v18, %v257
  %v259 = vadd.f32 %v26, %v258
  %v260 = vmul.f32 %v22, %v257
  %262 = vrot.lane.b32.xlu0 %v260, 124
  %v263 = vpop.permute.xlu0 %262
  %v265 = vadd.f32 %v259, %v263
  %v266 = vlaneseq
  %v267 = vshrl.u32 %v266, 7
  %v268 = vsub.s32 5, %v267
  %v269 = vrot.slane %v12, %v268
  %v270 = vmul.f32 %v18, %v269
  %v271 = vadd.f32 %v26, %v270
  %v272 = vmul.f32 %v22, %v269
  %274 = vrot.lane.b32.xlu0 %v272, 124
  %v275 = vpop.permute.xlu0 %274
  %v277 = vadd.f32 %v271, %v275
  %v278 = vtanh.pop %v121
  %v279 = vlaneseq
  %v280 = vshrl.u32 %v279, 7
  %v281 = vsub.s32 0, %v280
  %v282 = vrot.slane %v278, %v281
  %v283 = vmul.f32 %v30, %v282
  %v284 = vadd.f32 %v133, %v283
  %v285 = vlaneseq
  %v286 = vshrl.u32 %v285, 7
  %v287 = vsub.s32 1, %v286
  %v288 = vrot.slane %v278, %v287
  %v289 = vmul.f32 %v34, %v288
  %v290 = vadd.f32 %v284, %v289
  %v291 = vlaneseq
  %v292 = vshrl.u32 %v291, 7
  %v293 = vsub.s32 2, %v292
  %v294 = vrot.slane %v278, %v293
  %v295 = vmul.f32 %v38, %v294
  %v296 = vadd.f32 %v290, %v295
  %v297 = vlaneseq
  %v298 = vshrl.u32 %v297, 7
  %v299 = vsub.s32 3, %v298
  %v300 = vrot.slane %v278, %v299
  %v301 = vmul.f32 %v42, %v300
  %v302 = vadd.f32 %v296, %v301
  %v303 = vtanh.pop %v302
  %v304 = vlaneseq
  %v305 = vshrl.u32 %v304, 7
  %v306 = vsub.s32 0, %v305
  %v307 = vrot.slane %v303, %v306
  %v308 = vmul.f32 %v30, %v307
  %v309 = vadd.f32 %v145, %v308
  %v310 = vlaneseq
  %v311 = vshrl.u32 %v310, 7
  %v312 = vsub.s32 1, %v311
  %v313 = vrot.slane %v303, %v312
  %v314 = vmul.f32 %v34, %v313
  %v315 = vadd.f32 %v309, %v314
  %v316 = vlaneseq
  %v317 = vshrl.u32 %v316, 7
  %v318 = vsub.s32 2, %v317
  %v319 = vrot.slane %v303, %v318
  %v320 = vmul.f32 %v38, %v319
  %v321 = vadd.f32 %v315, %v320
  %v322 = vlaneseq
  %v323 = vshrl.u32 %v322, 7
  %v324 = vsub.s32 3, %v323
  %v325 = vrot.slane %v303, %v324
  %v326 = vmul.f32 %v42, %v325
  %v327 = vadd.f32 %v321, %v326
  %v328 = vtanh.pop %v327
  %v329 = vlaneseq
  %v330 = vshrl.u32 %v329, 7
  %v331 = vsub.s32 0, %v330
  %v332 = vrot.slane %v328, %v331
  %v333 = vmul.f32 %v30, %v332
  %v334 = vadd.f32 %v157, %v333
  %v335 = vlaneseq
  %v336 = vshrl.u32 %v335, 7
  %v337 = vsub.s32 1, %v336
  %v338 = vrot.slane %v328, %v337
  %v339 = vmul.f32 %v34, %v338
  %v340 = vadd.f32 %v334, %v339
  %v341 = vlaneseq
  %v342 = vshrl.u32 %v341, 7
  %v343 = vsub.s32 2, %v342
  %v344 = vrot.slane %v328, %v343
  %v345 = vmul.f32 %v38, %v344
  %v346 = vadd.f32 %v340, %v345
  %v347 = vlaneseq
  %v348 = vshrl.u32 %v347, 7
  %v349 = vsub.s32 3, %v348
  %v350 = vrot.slane %v328, %v349
  %v351 = vmul.f32 %v42, %v350
  %v352 = vadd.f32 %v346, %v351
  %v353 = vtanh.pop %v352
  %v354 = vlaneseq
  %v355 = vshrl.u32 %v354, 7
  %v356 = vsub.s32 0, %v355
  %v357 = vrot.slane %v353, %v356
  %v358 = vmul.f32 %v30, %v357
  %v359 = vadd.f32 %v169, %v358
  %v360 = vlaneseq
  %v361 = vshrl.u32 %v360, 7
  %v362 = vsub.s32 1, %v361
  %v363 = vrot.slane %v353, %v362
  %v364 = vmul.f32 %v34, %v363
  %v365 = vadd.f32 %v359, %v364
  %v366 = vlaneseq
  %v367 = vshrl.u32 %v366, 7
  %v368 = vsub.s32 2, %v367
  %v369 = vrot.slane %v353, %v368
  %v370 = vmul.f32 %v38, %v369
  %v371 = vadd.f32 %v365, %v370
  %v372 = vlaneseq
  %v373 = vshrl.u32 %v372, 7
  %v374 = vsub.s32 3, %v373
  %v375 = vrot.slane %v353, %v374
  %v376 = vmul.f32 %v42, %v375
  %v377 = vadd.f32 %v371, %v376
  %v378 = vtanh.pop %v377
  %v379 = vlaneseq
  %v380 = vshrl.u32 %v379, 7
  %v381 = vsub.s32 0, %v380
  %v382 = vrot.slane %v378, %v381
  %v383 = vmul.f32 %v30, %v382
  %v384 = vadd.f32 %v181, %v383
  %v385 = vlaneseq
  %v386 = vshrl.u32 %v385, 7
  %v387 = vsub.s32 1, %v386
  %v388 = vrot.slane %v378, %v387
  %v389 = vmul.f32 %v34, %v388
  %v390 = vadd.f32 %v384, %v389
  %v391 = vlaneseq
  %v392 = vshrl.u32 %v391, 7
  %v393 = vsub.s32 2, %v392
  %v394 = vrot.slane %v378, %v393
  %v395 = vmul.f32 %v38, %v394
  %v396 = vadd.f32 %v390, %v395
  %v397 = vlaneseq
  %v398 = vshrl.u32 %v397, 7
  %v399 = vsub.s32 3, %v398
  %v400 = vrot.slane %v378, %v399
  %v401 = vmul.f32 %v42, %v400
  %v402 = vadd.f32 %v396, %v401
  %v403 = vtanh.pop %v402
  %v404 = vlaneseq
  %v405 = vshrl.u32 %v404, 7
  %v406 = vsub.s32 0, %v405
  %v407 = vrot.slane %v403, %v406
  %v408 = vmul.f32 %v30, %v407
  %v409 = vadd.f32 %v193, %v408
  %v410 = vlaneseq
  %v411 = vshrl.u32 %v410, 7
  %v412 = vsub.s32 1, %v411
  %v413 = vrot.slane %v403, %v412
  %v414 = vmul.f32 %v34, %v413
  %v415 = vadd.f32 %v409, %v414
  %v416 = vlaneseq
  %v417 = vshrl.u32 %v416, 7
  %v418 = vsub.s32 2, %v417
  %v419 = vrot.slane %v403, %v418
  %v420 = vmul.f32 %v38, %v419
  %v421 = vadd.f32 %v415, %v420
  %v422 = vlaneseq
  %v423 = vshrl.u32 %v422, 7
  %v424 = vsub.s32 3, %v423
  %v425 = vrot.slane %v403, %v424
  %v426 = vmul.f32 %v42, %v425
  %v427 = vadd.f32 %v421, %v426
  %v428 = vtanh.pop %v427
  %v429 = vlaneseq
  %v430 = vshrl.u32 %v429, 7
  %v431 = vsub.s32 0, %v430
  %v432 = vrot.slane %v428, %v431
  %v433 = vmul.f32 %v30, %v432
  %v434 = vadd.f32 %v205, %v433
  %v435 = vlaneseq
  %v436 = vshrl.u32 %v435, 7
  %v437 = vsub.s32 1, %v436
  %v438 = vrot.slane %v428, %v437
  %v439 = vmul.f32 %v34, %v438
  %v440 = vadd.f32 %v434, %v439
  %v441 = vlaneseq
  %v442 = vshrl.u32 %v441, 7
  %v443 = vsub.s32 2, %v442
  %v444 = vrot.slane %v428, %v443
  %v445 = vmul.f32 %v38, %v444
  %v446 = vadd.f32 %v440, %v445
  %v447 = vlaneseq
  %v448 = vshrl.u32 %v447, 7
  %v449 = vsub.s32 3, %v448
  %v450 = vrot.slane %v428, %v449
  %v451 = vmul.f32 %v42, %v450
  %v452 = vadd.f32 %v446, %v451
  %v453 = vtanh.pop %v452
  %v454 = vlaneseq
  %v455 = vshrl.u32 %v454, 7
  %v456 = vsub.s32 0, %v455
  %v457 = vrot.slane %v453, %v456
  %v458 = vmul.f32 %v30, %v457
  %v459 = vadd.f32 %v217, %v458
  %v460 = vlaneseq
  %v461 = vshrl.u32 %v460, 7
  %v462 = vsub.s32 1, %v461
  %v463 = vrot.slane %v453, %v462
  %v464 = vmul.f32 %v34, %v463
  %v465 = vadd.f32 %v459, %v464
  %v466 = vlaneseq
  %v467 = vshrl.u32 %v466, 7
  %v468 = vsub.s32 2, %v467
  %v469 = vrot.slane %v453, %v468
  %v470 = vmul.f32 %v38, %v469
  %v471 = vadd.f32 %v465, %v470
  %v472 = vlaneseq
  %v473 = vshrl.u32 %v472, 7
  %v474 = vsub.s32 3, %v473
  %v475 = vrot.slane %v453, %v474
  %v476 = vmul.f32 %v42, %v475
  %v477 = vadd.f32 %v471, %v476
  %v478 = vtanh.pop %v477
  %v479 = vlaneseq
  %v480 = vshrl.u32 %v479, 7
  %v481 = vsub.s32 0, %v480
  %v482 = vrot.slane %v478, %v481
  %v483 = vmul.f32 %v30, %v482
  %v484 = vadd.f32 %v229, %v483
  %v485 = vlaneseq
  %v486 = vshrl.u32 %v485, 7
  %v487 = vsub.s32 1, %v486
  %v488 = vrot.slane %v478, %v487
  %v489 = vmul.f32 %v34, %v488
  %v490 = vadd.f32 %v484, %v489
  %v491 = vlaneseq
  %v492 = vshrl.u32 %v491, 7
  %v493 = vsub.s32 2, %v492
  %v494 = vrot.slane %v478, %v493
  %v495 = vmul.f32 %v38, %v494
  %v496 = vadd.f32 %v490, %v495
  %v497 = vlaneseq
  %v498 = vshrl.u32 %v497, 7
  %v499 = vsub.s32 3, %v498
  %v500 = vrot.slane %v478, %v499
  %v501 = vmul.f32 %v42, %v500
  %v502 = vadd.f32 %v496, %v501
  %v503 = vtanh.pop %v502
  %v504 = vlaneseq
  %v505 = vshrl.u32 %v504, 7
  %v506 = vsub.s32 0, %v505
  %v507 = vrot.slane %v503, %v506
  %v508 = vmul.f32 %v30, %v507
  %v509 = vadd.f32 %v241, %v508
  %v510 = vlaneseq
  %v511 = vshrl.u32 %v510, 7
  %v512 = vsub.s32 1, %v511
  %v513 = vrot.slane %v503, %v512
  %v514 = vmul.f32 %v34, %v513
  %v515 = vadd.f32 %v509, %v514
  %v516 = vlaneseq
  %v517 = vshrl.u32 %v516, 7
  %v518 = vsub.s32 2, %v517
  %v519 = vrot.slane %v503, %v518
  %v520 = vmul.f32 %v38, %v519
  %v521 = vadd.f32 %v515, %v520
  %v522 = vlaneseq
  %v523 = vshrl.u32 %v522, 7
  %v524 = vsub.s32 3, %v523
  %v525 = vrot.slane %v503, %v524
  %v526 = vmul.f32 %v42, %v525
  %v527 = vadd.f32 %v521, %v526
  %v528 = vtanh.pop %v527
  %v529 = vlaneseq
  %v530 = vshrl.u32 %v529, 7
  %v531 = vsub.s32 0, %v530
  %v532 = vrot.slane %v528, %v531
  %v533 = vmul.f32 %v30, %v532
  %v534 = vadd.f32 %v253, %v533
  %v535 = vlaneseq
  %v536 = vshrl.u32 %v535, 7
  %v537 = vsub.s32 1, %v536
  %v538 = vrot.slane %v528, %v537
  %v539 = vmul.f32 %v34, %v538
  %v540 = vadd.f32 %v534, %v539
  %v541 = vlaneseq
  %v542 = vshrl.u32 %v541, 7
  %v543 = vsub.s32 2, %v542
  %v544 = vrot.slane %v528, %v543
  %v545 = vmul.f32 %v38, %v544
  %v546 = vadd.f32 %v540, %v545
  %v547 = vlaneseq
  %v548 = vshrl.u32 %v547, 7
  %v549 = vsub.s32 3, %v548
  %v550 = vrot.slane %v528, %v549
  %v551 = vmul.f32 %v42, %v550
  %v552 = vadd.f32 %v546, %v551
  %v553 = vtanh.pop %v552
  %v554 = vlaneseq
  %v555 = vshrl.u32 %v554, 7
  %v556 = vsub.s32 0, %v555
  %v557 = vrot.slane %v553, %v556
  %v558 = vmul.f32 %v30, %v557
  %v559 = vadd.f32 %v265, %v558
  %v560 = vlaneseq
  %v561 = vshrl.u32 %v560, 7
  %v562 = vsub.s32 1, %v561
  %v563 = vrot.slane %v553, %v562
  %v564 = vmul.f32 %v34, %v563
  %v565 = vadd.f32 %v559, %v564
  %v566 = vlaneseq
  %v567 = vshrl.u32 %v566, 7
  %v568 = vsub.s32 2, %v567
  %v569 = vrot.slane %v553, %v568
  %v570 = vmul.f32 %v38, %v569
  %v571 = vadd.f32 %v565, %v570
  %v572 = vlaneseq
  %v573 = vshrl.u32 %v572, 7
  %v574 = vsub.s32 3, %v573
  %v575 = vrot.slane %v553, %v574
  %v576 = vmul.f32 %v42, %v575
  %v577 = vadd.f32 %v571, %v576
  %v578 = vtanh.pop %v577
  %v579 = vlaneseq
  %v580 = vshrl.u32 %v579, 7
  %v581 = vsub.s32 0, %v580
  %v582 = vrot.slane %v578, %v581
  %v583 = vmul.f32 %v30, %v582
  %v584 = vadd.f32 %v277, %v583
  %v585 = vlaneseq
  %v586 = vshrl.u32 %v585, 7
  %v587 = vsub.s32 1, %v586
  %v588 = vrot.slane %v578, %v587
  %v589 = vmul.f32 %v34, %v588
  %v590 = vadd.f32 %v584, %v589
  %v591 = vlaneseq
  %v592 = vshrl.u32 %v591, 7
  %v593 = vsub.s32 2, %v592
  %v594 = vrot.slane %v578, %v593
  %v595 = vmul.f32 %v38, %v594
  %v596 = vadd.f32 %v590, %v595
  %v597 = vlaneseq
  %v598 = vshrl.u32 %v597, 7
  %v599 = vsub.s32 3, %v598
  %v600 = vrot.slane %v578, %v599
  %v601 = vmul.f32 %v42, %v600
  %v602 = vadd.f32 %v596, %v601
  %v603 = vtanh.pop %v602
  %v604 = vlaneseq
  %v605 = vshrl.u32 %v604, 7
  %v606 = vsub.s32 0, %v605
  %v607 = vrot.slane %v603, %v606
  %v608 = vmul.f32 %v50, %v607
  %v609 = vmul.f32 %v55, %v607
  %v610 = vmul.f32 %v60, %v607
  %v611 = vadd.f32 %v100, %v608
  %v612 = vadd.f32 %v104, %v609
  %v613 = vadd.f32 %v108, %v610
  %v614 = vlaneseq
  %v615 = vshrl.u32 %v614, 7
  %v616 = vsub.s32 1, %v615
  %v617 = vrot.slane %v603, %v616
  %v618 = vmul.f32 %v64, %v617
  %v619 = vmul.f32 %v68, %v617
  %v620 = vmul.f32 %v72, %v617
  %v621 = vadd.f32 %v611, %v618
  %v622 = vadd.f32 %v612, %v619
  %v623 = vadd.f32 %v613, %v620
  %v624 = vlaneseq
  %v625 = vshrl.u32 %v624, 7
  %v626 = vsub.s32 2, %v625
  %v627 = vrot.slane %v603, %v626
  %v628 = vmul.f32 %v76, %v627
  %v629 = vmul.f32 %v80, %v627
  %v630 = vmul.f32 %v84, %v627
  %v631 = vadd.f32 %v621, %v628
  %v632 = vadd.f32 %v622, %v629
  %v633 = vadd.f32 %v623, %v630
  %v634 = vlaneseq
  %v635 = vshrl.u32 %v634, 7
  %v636 = vsub.s32 3, %v635
  %v637 = vrot.slane %v603, %v636
  %v638 = vmul.f32 %v88, %v637
  %v639 = vmul.f32 %v92, %v637
  %v640 = vmul.f32 %v96, %v637
  %v641 = vadd.f32 %v631, %v638
  %v642 = vadd.f32 %v632, %v639
  %v643 = vadd.f32 %v633, %v640
  %v644 = vsub.f32 %v11, %v641
  %v645 = vsub.f32 %v12, %v642
  %v646 = vld [vmem:[%s1] sm:$0x1f]
  %648 = vset.pattern.permute.xlu0 12
  %649 = vperm.xlu0 %648, %v646
  %v650 = vpop.permute.xlu0 %649
  %652 = vset.pattern.permute.xlu0 13
  %653 = vperm.xlu0 %652, %v646
  %v654 = vpop.permute.xlu0 %653
  %656 = vset.pattern.permute.xlu0 14
  %657 = vperm.xlu0 %656, %v646
  %v658 = vpop.permute.xlu0 %657
  %660 = vset.pattern.permute.xlu0 15
  %661 = vperm.xlu0 %660, %v646
  %v662 = vpop.permute.xlu0 %661
  %664 = vset.pattern.permute.xlu0 16
  %665 = vperm.xlu0 %664, %v646
  %v666 = vpop.permute.xlu0 %665
  %668 = vset.pattern.permute.xlu0 17
  %669 = vperm.xlu0 %668, %v646
  %v670 = vpop.permute.xlu0 %669
  %672 = vset.pattern.permute.xlu0 18
  %673 = vperm.xlu0 %672, %v646
  %v674 = vpop.permute.xlu0 %673
  %676 = vset.pattern.permute.xlu0 19
  %677 = vperm.xlu0 %676, %v44
  %v678 = vpop.permute.xlu0 %677
  %680 = vset.pattern.permute.xlu0 19
  %681 = vperm.xlu0 %680, %v45
  %v682 = vpop.permute.xlu0 %681
  %684 = vset.pattern.permute.xlu0 19
  %685 = vperm.xlu0 %684, %v46
  %v686 = vpop.permute.xlu0 %685
  %688 = vset.pattern.permute.xlu0 20
  %689 = vperm.xlu0 %688, %v44
  %v690 = vpop.permute.xlu0 %689
  %692 = vset.pattern.permute.xlu0 20
  %693 = vperm.xlu0 %692, %v45
  %v694 = vpop.permute.xlu0 %693
  %696 = vset.pattern.permute.xlu0 20
  %697 = vperm.xlu0 %696, %v46
  %v698 = vpop.permute.xlu0 %697
  %700 = vset.pattern.permute.xlu0 21
  %701 = vperm.xlu0 %700, %v44
  %v702 = vpop.permute.xlu0 %701
  %704 = vset.pattern.permute.xlu0 21
  %705 = vperm.xlu0 %704, %v45
  %v706 = vpop.permute.xlu0 %705
  %708 = vset.pattern.permute.xlu0 21
  %709 = vperm.xlu0 %708, %v46
  %v710 = vpop.permute.xlu0 %709
  %712 = vset.pattern.permute.xlu0 22
  %713 = vperm.xlu0 %712, %v44
  %v714 = vpop.permute.xlu0 %713
  %716 = vset.pattern.permute.xlu0 22
  %717 = vperm.xlu0 %716, %v45
  %v718 = vpop.permute.xlu0 %717
  %720 = vset.pattern.permute.xlu0 22
  %721 = vperm.xlu0 %720, %v46
  %v722 = vpop.permute.xlu0 %721
  %724 = vset.pattern.permute.xlu0 23
  %725 = vperm.xlu0 %724, %v44
  %v726 = vpop.permute.xlu0 %725
  %728 = vset.pattern.permute.xlu0 23
  %729 = vperm.xlu0 %728, %v45
  %v730 = vpop.permute.xlu0 %729
  %732 = vset.pattern.permute.xlu0 23
  %733 = vperm.xlu0 %732, %v46
  %v734 = vpop.permute.xlu0 %733
  %736 = vset.pattern.permute.xlu0 24
  %737 = vperm.xlu0 %736, %v44
  %v738 = vpop.permute.xlu0 %737
  %740 = vset.pattern.permute.xlu0 24
  %741 = vperm.xlu0 %740, %v45
  %v742 = vpop.permute.xlu0 %741
  %744 = vset.pattern.permute.xlu0 24
  %745 = vperm.xlu0 %744, %v46
  %v746 = vpop.permute.xlu0 %745
  %v748 = vlaneseq
  %v749 = vshrl.u32 %v748, 7
  %v750 = vsub.s32 0, %v749
  %v751 = vrot.slane %v644, %v750
  %v752 = vmul.f32 %v650, %v751
  %v753 = vadd.f32 %v654, %v752
  %v754 = vlaneseq
  %v755 = vshrl.u32 %v754, 7
  %v756 = vsub.s32 1, %v755
  %v757 = vrot.slane %v644, %v756
  %v758 = vmul.f32 %v650, %v757
  %v759 = vadd.f32 %v654, %v758
  %v760 = vlaneseq
  %v761 = vshrl.u32 %v760, 7
  %v762 = vsub.s32 2, %v761
  %v763 = vrot.slane %v644, %v762
  %v764 = vmul.f32 %v650, %v763
  %v765 = vadd.f32 %v654, %v764
  %v766 = vlaneseq
  %v767 = vshrl.u32 %v766, 7
  %v768 = vsub.s32 3, %v767
  %v769 = vrot.slane %v644, %v768
  %v770 = vmul.f32 %v650, %v769
  %v771 = vadd.f32 %v654, %v770
  %v772 = vlaneseq
  %v773 = vshrl.u32 %v772, 7
  %v774 = vsub.s32 4, %v773
  %v775 = vrot.slane %v644, %v774
  %v776 = vmul.f32 %v650, %v775
  %v777 = vadd.f32 %v654, %v776
  %v778 = vlaneseq
  %v779 = vshrl.u32 %v778, 7
  %v780 = vsub.s32 5, %v779
  %v781 = vrot.slane %v644, %v780
  %v782 = vmul.f32 %v650, %v781
  %v783 = vadd.f32 %v654, %v782
  %v784 = vlaneseq
  %v785 = vshrl.u32 %v784, 7
  %v786 = vsub.s32 6, %v785
  %v787 = vrot.slane %v644, %v786
  %v788 = vmul.f32 %v650, %v787
  %v789 = vadd.f32 %v654, %v788
  %v790 = vlaneseq
  %v791 = vshrl.u32 %v790, 7
  %v792 = vsub.s32 7, %v791
  %v793 = vrot.slane %v644, %v792
  %v794 = vmul.f32 %v650, %v793
  %v795 = vadd.f32 %v654, %v794
  %v796 = vlaneseq
  %v797 = vshrl.u32 %v796, 7
  %v798 = vsub.s32 0, %v797
  %v799 = vrot.slane %v645, %v798
  %v800 = vmul.f32 %v650, %v799
  %v801 = vadd.f32 %v654, %v800
  %v802 = vlaneseq
  %v803 = vshrl.u32 %v802, 7
  %v804 = vsub.s32 1, %v803
  %v805 = vrot.slane %v645, %v804
  %v806 = vmul.f32 %v650, %v805
  %v807 = vadd.f32 %v654, %v806
  %v808 = vlaneseq
  %v809 = vshrl.u32 %v808, 7
  %v810 = vsub.s32 2, %v809
  %v811 = vrot.slane %v645, %v810
  %v812 = vmul.f32 %v650, %v811
  %v813 = vadd.f32 %v654, %v812
  %v814 = vlaneseq
  %v815 = vshrl.u32 %v814, 7
  %v816 = vsub.s32 3, %v815
  %v817 = vrot.slane %v645, %v816
  %v818 = vmul.f32 %v650, %v817
  %v819 = vadd.f32 %v654, %v818
  %v820 = vlaneseq
  %v821 = vshrl.u32 %v820, 7
  %v822 = vsub.s32 4, %v821
  %v823 = vrot.slane %v645, %v822
  %v824 = vmul.f32 %v650, %v823
  %v825 = vadd.f32 %v654, %v824
  %v826 = vlaneseq
  %v827 = vshrl.u32 %v826, 7
  %v828 = vsub.s32 5, %v827
  %v829 = vrot.slane %v645, %v828
  %v830 = vmul.f32 %v650, %v829
  %v831 = vadd.f32 %v654, %v830
  %v832 = vtanh.pop %v753
  %v833 = vlaneseq
  %v834 = vshrl.u32 %v833, 7
  %v835 = vsub.s32 0, %v834
  %v836 = vrot.slane %v832, %v835
  %v837 = vmul.f32 %v658, %v836
  %v838 = vadd.f32 %v759, %v837
  %v839 = vlaneseq
  %v840 = vshrl.u32 %v839, 7
  %v841 = vsub.s32 1, %v840
  %v842 = vrot.slane %v832, %v841
  %v843 = vmul.f32 %v662, %v842
  %v844 = vadd.f32 %v838, %v843
  %v845 = vlaneseq
  %v846 = vshrl.u32 %v845, 7
  %v847 = vsub.s32 2, %v846
  %v848 = vrot.slane %v832, %v847
  %v849 = vmul.f32 %v666, %v848
  %v850 = vadd.f32 %v844, %v849
  %v851 = vlaneseq
  %v852 = vshrl.u32 %v851, 7
  %v853 = vsub.s32 3, %v852
  %v854 = vrot.slane %v832, %v853
  %v855 = vmul.f32 %v670, %v854
  %v856 = vadd.f32 %v850, %v855
  %v857 = vlaneseq
  %v858 = vshrl.u32 %v857, 7
  %v859 = vsub.s32 4, %v858
  %v860 = vrot.slane %v832, %v859
  %v861 = vmul.f32 %v674, %v860
  %v862 = vadd.f32 %v856, %v861
  %v863 = vtanh.pop %v862
  %v864 = vlaneseq
  %v865 = vshrl.u32 %v864, 7
  %v866 = vsub.s32 0, %v865
  %v867 = vrot.slane %v863, %v866
  %v868 = vmul.f32 %v658, %v867
  %v869 = vadd.f32 %v765, %v868
  %v870 = vlaneseq
  %v871 = vshrl.u32 %v870, 7
  %v872 = vsub.s32 1, %v871
  %v873 = vrot.slane %v863, %v872
  %v874 = vmul.f32 %v662, %v873
  %v875 = vadd.f32 %v869, %v874
  %v876 = vlaneseq
  %v877 = vshrl.u32 %v876, 7
  %v878 = vsub.s32 2, %v877
  %v879 = vrot.slane %v863, %v878
  %v880 = vmul.f32 %v666, %v879
  %v881 = vadd.f32 %v875, %v880
  %v882 = vlaneseq
  %v883 = vshrl.u32 %v882, 7
  %v884 = vsub.s32 3, %v883
  %v885 = vrot.slane %v863, %v884
  %v886 = vmul.f32 %v670, %v885
  %v887 = vadd.f32 %v881, %v886
  %v888 = vlaneseq
  %v889 = vshrl.u32 %v888, 7
  %v890 = vsub.s32 4, %v889
  %v891 = vrot.slane %v863, %v890
  %v892 = vmul.f32 %v674, %v891
  %v893 = vadd.f32 %v887, %v892
  %v894 = vtanh.pop %v893
  %v895 = vlaneseq
  %v896 = vshrl.u32 %v895, 7
  %v897 = vsub.s32 0, %v896
  %v898 = vrot.slane %v894, %v897
  %v899 = vmul.f32 %v658, %v898
  %v900 = vadd.f32 %v771, %v899
  %v901 = vlaneseq
  %v902 = vshrl.u32 %v901, 7
  %v903 = vsub.s32 1, %v902
  %v904 = vrot.slane %v894, %v903
  %v905 = vmul.f32 %v662, %v904
  %v906 = vadd.f32 %v900, %v905
  %v907 = vlaneseq
  %v908 = vshrl.u32 %v907, 7
  %v909 = vsub.s32 2, %v908
  %v910 = vrot.slane %v894, %v909
  %v911 = vmul.f32 %v666, %v910
  %v912 = vadd.f32 %v906, %v911
  %v913 = vlaneseq
  %v914 = vshrl.u32 %v913, 7
  %v915 = vsub.s32 3, %v914
  %v916 = vrot.slane %v894, %v915
  %v917 = vmul.f32 %v670, %v916
  %v918 = vadd.f32 %v912, %v917
  %v919 = vlaneseq
  %v920 = vshrl.u32 %v919, 7
  %v921 = vsub.s32 4, %v920
  %v922 = vrot.slane %v894, %v921
  %v923 = vmul.f32 %v674, %v922
  %v924 = vadd.f32 %v918, %v923
  %v925 = vtanh.pop %v924
  %v926 = vlaneseq
  %v927 = vshrl.u32 %v926, 7
  %v928 = vsub.s32 0, %v927
  %v929 = vrot.slane %v925, %v928
  %v930 = vmul.f32 %v658, %v929
  %v931 = vadd.f32 %v777, %v930
  %v932 = vlaneseq
  %v933 = vshrl.u32 %v932, 7
  %v934 = vsub.s32 1, %v933
  %v935 = vrot.slane %v925, %v934
  %v936 = vmul.f32 %v662, %v935
  %v937 = vadd.f32 %v931, %v936
  %v938 = vlaneseq
  %v939 = vshrl.u32 %v938, 7
  %v940 = vsub.s32 2, %v939
  %v941 = vrot.slane %v925, %v940
  %v942 = vmul.f32 %v666, %v941
  %v943 = vadd.f32 %v937, %v942
  %v944 = vlaneseq
  %v945 = vshrl.u32 %v944, 7
  %v946 = vsub.s32 3, %v945
  %v947 = vrot.slane %v925, %v946
  %v948 = vmul.f32 %v670, %v947
  %v949 = vadd.f32 %v943, %v948
  %v950 = vlaneseq
  %v951 = vshrl.u32 %v950, 7
  %v952 = vsub.s32 4, %v951
  %v953 = vrot.slane %v925, %v952
  %v954 = vmul.f32 %v674, %v953
  %v955 = vadd.f32 %v949, %v954
  %v956 = vtanh.pop %v955
  %v957 = vlaneseq
  %v958 = vshrl.u32 %v957, 7
  %v959 = vsub.s32 0, %v958
  %v960 = vrot.slane %v956, %v959
  %v961 = vmul.f32 %v658, %v960
  %v962 = vadd.f32 %v783, %v961
  %v963 = vlaneseq
  %v964 = vshrl.u32 %v963, 7
  %v965 = vsub.s32 1, %v964
  %v966 = vrot.slane %v956, %v965
  %v967 = vmul.f32 %v662, %v966
  %v968 = vadd.f32 %v962, %v967
  %v969 = vlaneseq
  %v970 = vshrl.u32 %v969, 7
  %v971 = vsub.s32 2, %v970
  %v972 = vrot.slane %v956, %v971
  %v973 = vmul.f32 %v666, %v972
  %v974 = vadd.f32 %v968, %v973
  %v975 = vlaneseq
  %v976 = vshrl.u32 %v975, 7
  %v977 = vsub.s32 3, %v976
  %v978 = vrot.slane %v956, %v977
  %v979 = vmul.f32 %v670, %v978
  %v980 = vadd.f32 %v974, %v979
  %v981 = vlaneseq
  %v982 = vshrl.u32 %v981, 7
  %v983 = vsub.s32 4, %v982
  %v984 = vrot.slane %v956, %v983
  %v985 = vmul.f32 %v674, %v984
  %v986 = vadd.f32 %v980, %v985
  %v987 = vtanh.pop %v986
  %v988 = vlaneseq
  %v989 = vshrl.u32 %v988, 7
  %v990 = vsub.s32 0, %v989
  %v991 = vrot.slane %v987, %v990
  %v992 = vmul.f32 %v658, %v991
  %v993 = vadd.f32 %v789, %v992
  %v994 = vlaneseq
  %v995 = vshrl.u32 %v994, 7
  %v996 = vsub.s32 1, %v995
  %v997 = vrot.slane %v987, %v996
  %v998 = vmul.f32 %v662, %v997
  %v999 = vadd.f32 %v993, %v998
  %v1000 = vlaneseq
  %v1001 = vshrl.u32 %v1000, 7
  %v1002 = vsub.s32 2, %v1001
  %v1003 = vrot.slane %v987, %v1002
  %v1004 = vmul.f32 %v666, %v1003
  %v1005 = vadd.f32 %v999, %v1004
  %v1006 = vlaneseq
  %v1007 = vshrl.u32 %v1006, 7
  %v1008 = vsub.s32 3, %v1007
  %v1009 = vrot.slane %v987, %v1008
  %v1010 = vmul.f32 %v670, %v1009
  %v1011 = vadd.f32 %v1005, %v1010
  %v1012 = vlaneseq
  %v1013 = vshrl.u32 %v1012, 7
  %v1014 = vsub.s32 4, %v1013
  %v1015 = vrot.slane %v987, %v1014
  %v1016 = vmul.f32 %v674, %v1015
  %v1017 = vadd.f32 %v1011, %v1016
  %v1018 = vtanh.pop %v1017
  %v1019 = vlaneseq
  %v1020 = vshrl.u32 %v1019, 7
  %v1021 = vsub.s32 0, %v1020
  %v1022 = vrot.slane %v1018, %v1021
  %v1023 = vmul.f32 %v658, %v1022
  %v1024 = vadd.f32 %v795, %v1023
  %v1025 = vlaneseq
  %v1026 = vshrl.u32 %v1025, 7
  %v1027 = vsub.s32 1, %v1026
  %v1028 = vrot.slane %v1018, %v1027
  %v1029 = vmul.f32 %v662, %v1028
  %v1030 = vadd.f32 %v1024, %v1029
  %v1031 = vlaneseq
  %v1032 = vshrl.u32 %v1031, 7
  %v1033 = vsub.s32 2, %v1032
  %v1034 = vrot.slane %v1018, %v1033
  %v1035 = vmul.f32 %v666, %v1034
  %v1036 = vadd.f32 %v1030, %v1035
  %v1037 = vlaneseq
  %v1038 = vshrl.u32 %v1037, 7
  %v1039 = vsub.s32 3, %v1038
  %v1040 = vrot.slane %v1018, %v1039
  %v1041 = vmul.f32 %v670, %v1040
  %v1042 = vadd.f32 %v1036, %v1041
  %v1043 = vlaneseq
  %v1044 = vshrl.u32 %v1043, 7
  %v1045 = vsub.s32 4, %v1044
  %v1046 = vrot.slane %v1018, %v1045
  %v1047 = vmul.f32 %v674, %v1046
  %v1048 = vadd.f32 %v1042, %v1047
  %v1049 = vtanh.pop %v1048
  %v1050 = vlaneseq
  %v1051 = vshrl.u32 %v1050, 7
  %v1052 = vsub.s32 0, %v1051
  %v1053 = vrot.slane %v1049, %v1052
  %v1054 = vmul.f32 %v658, %v1053
  %v1055 = vadd.f32 %v801, %v1054
  %v1056 = vlaneseq
  %v1057 = vshrl.u32 %v1056, 7
  %v1058 = vsub.s32 1, %v1057
  %v1059 = vrot.slane %v1049, %v1058
  %v1060 = vmul.f32 %v662, %v1059
  %v1061 = vadd.f32 %v1055, %v1060
  %v1062 = vlaneseq
  %v1063 = vshrl.u32 %v1062, 7
  %v1064 = vsub.s32 2, %v1063
  %v1065 = vrot.slane %v1049, %v1064
  %v1066 = vmul.f32 %v666, %v1065
  %v1067 = vadd.f32 %v1061, %v1066
  %v1068 = vlaneseq
  %v1069 = vshrl.u32 %v1068, 7
  %v1070 = vsub.s32 3, %v1069
  %v1071 = vrot.slane %v1049, %v1070
  %v1072 = vmul.f32 %v670, %v1071
  %v1073 = vadd.f32 %v1067, %v1072
  %v1074 = vlaneseq
  %v1075 = vshrl.u32 %v1074, 7
  %v1076 = vsub.s32 4, %v1075
  %v1077 = vrot.slane %v1049, %v1076
  %v1078 = vmul.f32 %v674, %v1077
  %v1079 = vadd.f32 %v1073, %v1078
  %v1080 = vtanh.pop %v1079
  %v1081 = vlaneseq
  %v1082 = vshrl.u32 %v1081, 7
  %v1083 = vsub.s32 0, %v1082
  %v1084 = vrot.slane %v1080, %v1083
  %v1085 = vmul.f32 %v658, %v1084
  %v1086 = vadd.f32 %v807, %v1085
  %v1087 = vlaneseq
  %v1088 = vshrl.u32 %v1087, 7
  %v1089 = vsub.s32 1, %v1088
  %v1090 = vrot.slane %v1080, %v1089
  %v1091 = vmul.f32 %v662, %v1090
  %v1092 = vadd.f32 %v1086, %v1091
  %v1093 = vlaneseq
  %v1094 = vshrl.u32 %v1093, 7
  %v1095 = vsub.s32 2, %v1094
  %v1096 = vrot.slane %v1080, %v1095
  %v1097 = vmul.f32 %v666, %v1096
  %v1098 = vadd.f32 %v1092, %v1097
  %v1099 = vlaneseq
  %v1100 = vshrl.u32 %v1099, 7
  %v1101 = vsub.s32 3, %v1100
  %v1102 = vrot.slane %v1080, %v1101
  %v1103 = vmul.f32 %v670, %v1102
  %v1104 = vadd.f32 %v1098, %v1103
  %v1105 = vlaneseq
  %v1106 = vshrl.u32 %v1105, 7
  %v1107 = vsub.s32 4, %v1106
  %v1108 = vrot.slane %v1080, %v1107
  %v1109 = vmul.f32 %v674, %v1108
  %v1110 = vadd.f32 %v1104, %v1109
  %v1111 = vtanh.pop %v1110
  %v1112 = vlaneseq
  %v1113 = vshrl.u32 %v1112, 7
  %v1114 = vsub.s32 0, %v1113
  %v1115 = vrot.slane %v1111, %v1114
  %v1116 = vmul.f32 %v658, %v1115
  %v1117 = vadd.f32 %v813, %v1116
  %v1118 = vlaneseq
  %v1119 = vshrl.u32 %v1118, 7
  %v1120 = vsub.s32 1, %v1119
  %v1121 = vrot.slane %v1111, %v1120
  %v1122 = vmul.f32 %v662, %v1121
  %v1123 = vadd.f32 %v1117, %v1122
  %v1124 = vlaneseq
  %v1125 = vshrl.u32 %v1124, 7
  %v1126 = vsub.s32 2, %v1125
  %v1127 = vrot.slane %v1111, %v1126
  %v1128 = vmul.f32 %v666, %v1127
  %v1129 = vadd.f32 %v1123, %v1128
  %v1130 = vlaneseq
  %v1131 = vshrl.u32 %v1130, 7
  %v1132 = vsub.s32 3, %v1131
  %v1133 = vrot.slane %v1111, %v1132
  %v1134 = vmul.f32 %v670, %v1133
  %v1135 = vadd.f32 %v1129, %v1134
  %v1136 = vlaneseq
  %v1137 = vshrl.u32 %v1136, 7
  %v1138 = vsub.s32 4, %v1137
  %v1139 = vrot.slane %v1111, %v1138
  %v1140 = vmul.f32 %v674, %v1139
  %v1141 = vadd.f32 %v1135, %v1140
  %v1142 = vtanh.pop %v1141
  %v1143 = vlaneseq
  %v1144 = vshrl.u32 %v1143, 7
  %v1145 = vsub.s32 0, %v1144
  %v1146 = vrot.slane %v1142, %v1145
  %v1147 = vmul.f32 %v658, %v1146
  %v1148 = vadd.f32 %v819, %v1147
  %v1149 = vlaneseq
  %v1150 = vshrl.u32 %v1149, 7
  %v1151 = vsub.s32 1, %v1150
  %v1152 = vrot.slane %v1142, %v1151
  %v1153 = vmul.f32 %v662, %v1152
  %v1154 = vadd.f32 %v1148, %v1153
  %v1155 = vlaneseq
  %v1156 = vshrl.u32 %v1155, 7
  %v1157 = vsub.s32 2, %v1156
  %v1158 = vrot.slane %v1142, %v1157
  %v1159 = vmul.f32 %v666, %v1158
  %v1160 = vadd.f32 %v1154, %v1159
  %v1161 = vlaneseq
  %v1162 = vshrl.u32 %v1161, 7
  %v1163 = vsub.s32 3, %v1162
  %v1164 = vrot.slane %v1142, %v1163
  %v1165 = vmul.f32 %v670, %v1164
  %v1166 = vadd.f32 %v1160, %v1165
  %v1167 = vlaneseq
  %v1168 = vshrl.u32 %v1167, 7
  %v1169 = vsub.s32 4, %v1168
  %v1170 = vrot.slane %v1142, %v1169
  %v1171 = vmul.f32 %v674, %v1170
  %v1172 = vadd.f32 %v1166, %v1171
  %v1173 = vtanh.pop %v1172
  %v1174 = vlaneseq
  %v1175 = vshrl.u32 %v1174, 7
  %v1176 = vsub.s32 0, %v1175
  %v1177 = vrot.slane %v1173, %v1176
  %v1178 = vmul.f32 %v658, %v1177
  %v1179 = vadd.f32 %v825, %v1178
  %v1180 = vlaneseq
  %v1181 = vshrl.u32 %v1180, 7
  %v1182 = vsub.s32 1, %v1181
  %v1183 = vrot.slane %v1173, %v1182
  %v1184 = vmul.f32 %v662, %v1183
  %v1185 = vadd.f32 %v1179, %v1184
  %v1186 = vlaneseq
  %v1187 = vshrl.u32 %v1186, 7
  %v1188 = vsub.s32 2, %v1187
  %v1189 = vrot.slane %v1173, %v1188
  %v1190 = vmul.f32 %v666, %v1189
  %v1191 = vadd.f32 %v1185, %v1190
  %v1192 = vlaneseq
  %v1193 = vshrl.u32 %v1192, 7
  %v1194 = vsub.s32 3, %v1193
  %v1195 = vrot.slane %v1173, %v1194
  %v1196 = vmul.f32 %v670, %v1195
  %v1197 = vadd.f32 %v1191, %v1196
  %v1198 = vlaneseq
  %v1199 = vshrl.u32 %v1198, 7
  %v1200 = vsub.s32 4, %v1199
  %v1201 = vrot.slane %v1173, %v1200
  %v1202 = vmul.f32 %v674, %v1201
  %v1203 = vadd.f32 %v1197, %v1202
  %v1204 = vtanh.pop %v1203
  %v1205 = vlaneseq
  %v1206 = vshrl.u32 %v1205, 7
  %v1207 = vsub.s32 0, %v1206
  %v1208 = vrot.slane %v1204, %v1207
  %v1209 = vmul.f32 %v658, %v1208
  %v1210 = vadd.f32 %v831, %v1209
  %v1211 = vlaneseq
  %v1212 = vshrl.u32 %v1211, 7
  %v1213 = vsub.s32 1, %v1212
  %v1214 = vrot.slane %v1204, %v1213
  %v1215 = vmul.f32 %v662, %v1214
  %v1216 = vadd.f32 %v1210, %v1215
  %v1217 = vlaneseq
  %v1218 = vshrl.u32 %v1217, 7
  %v1219 = vsub.s32 2, %v1218
  %v1220 = vrot.slane %v1204, %v1219
  %v1221 = vmul.f32 %v666, %v1220
  %v1222 = vadd.f32 %v1216, %v1221
  %v1223 = vlaneseq
  %v1224 = vshrl.u32 %v1223, 7
  %v1225 = vsub.s32 3, %v1224
  %v1226 = vrot.slane %v1204, %v1225
  %v1227 = vmul.f32 %v670, %v1226
  %v1228 = vadd.f32 %v1222, %v1227
  %v1229 = vlaneseq
  %v1230 = vshrl.u32 %v1229, 7
  %v1231 = vsub.s32 4, %v1230
  %v1232 = vrot.slane %v1204, %v1231
  %v1233 = vmul.f32 %v674, %v1232
  %v1234 = vadd.f32 %v1228, %v1233
  %v1235 = vtanh.pop %v1234
  %v1236 = vlaneseq
  %v1237 = vshrl.u32 %v1236, 7
  %v1238 = vsub.s32 0, %v1237
  %v1239 = vrot.slane %v1235, %v1238
  %v1240 = vmul.f32 %v678, %v1239
  %v1241 = vmul.f32 %v682, %v1239
  %v1242 = vmul.f32 %v686, %v1239
  %v1243 = vadd.f32 %v738, %v1240
  %v1244 = vadd.f32 %v742, %v1241
  %v1245 = vadd.f32 %v746, %v1242
  %v1246 = vlaneseq
  %v1247 = vshrl.u32 %v1246, 7
  %v1248 = vsub.s32 1, %v1247
  %v1249 = vrot.slane %v1235, %v1248
  %v1250 = vmul.f32 %v690, %v1249
  %v1251 = vmul.f32 %v694, %v1249
  %v1252 = vmul.f32 %v698, %v1249
  %v1253 = vadd.f32 %v1243, %v1250
  %v1254 = vadd.f32 %v1244, %v1251
  %v1255 = vadd.f32 %v1245, %v1252
  %v1256 = vlaneseq
  %v1257 = vshrl.u32 %v1256, 7
  %v1258 = vsub.s32 2, %v1257
  %v1259 = vrot.slane %v1235, %v1258
  %v1260 = vmul.f32 %v702, %v1259
  %v1261 = vmul.f32 %v706, %v1259
  %v1262 = vmul.f32 %v710, %v1259
  %v1263 = vadd.f32 %v1253, %v1260
  %v1264 = vadd.f32 %v1254, %v1261
  %v1265 = vadd.f32 %v1255, %v1262
  %v1266 = vlaneseq
  %v1267 = vshrl.u32 %v1266, 7
  %v1268 = vsub.s32 3, %v1267
  %v1269 = vrot.slane %v1235, %v1268
  %v1270 = vmul.f32 %v714, %v1269
  %v1271 = vmul.f32 %v718, %v1269
  %v1272 = vmul.f32 %v722, %v1269
  %v1273 = vadd.f32 %v1263, %v1270
  %v1274 = vadd.f32 %v1264, %v1271
  %v1275 = vadd.f32 %v1265, %v1272
  %v1276 = vlaneseq
  %v1277 = vshrl.u32 %v1276, 7
  %v1278 = vsub.s32 4, %v1277
  %v1279 = vrot.slane %v1235, %v1278
  %v1280 = vmul.f32 %v726, %v1279
  %v1281 = vmul.f32 %v730, %v1279
  %v1282 = vmul.f32 %v734, %v1279
  %v1283 = vadd.f32 %v1273, %v1280
  %v1284 = vadd.f32 %v1274, %v1281
  %v1285 = vadd.f32 %v1275, %v1282
  %1286 = vset.pattern.permute.xlu0 25
  %1287 = vperm.xlu0 %1286, %v44
  %v1288 = vpop.permute.xlu0 %1287
  %1290 = vset.pattern.permute.xlu0 25
  %1291 = vperm.xlu0 %1290, %v45
  %v1292 = vpop.permute.xlu0 %1291
  %1294 = vset.pattern.permute.xlu0 25
  %1295 = vperm.xlu0 %1294, %v46
  %v1296 = vpop.permute.xlu0 %1295
  %v1298 = vadd.f32 %v641, %v1283
  %v1299 = vadd.f32 %v642, %v1284
  %v1300 = vadd.f32 %v643, %v1285
  %v1301 = vmul.f32 %v1288, %v1298
  %v1302 = vmul.f32 %v1292, %v1299
  %v1303 = vmul.f32 %v1296, %v1300
  %v1304 = vadd.f32 %v11, %v1301
  %v1305 = vadd.f32 %v12, %v1302
  %v1306 = vadd.f32 %v13, %v1303
  %vm1307 = vcmask 31744
  %1308 = vst.msk [vmem:[%s2] sm:$0xff] %vm1307, %v1304
  %1309 = vst.msk [vmem:[%s2 + $0x8] sm:$0xff] %vm1307, %v1305
  %vm1310 = vcmask 24576
  %1311 = vst.msk [vmem:[%s2 + $0x10] sm:$0x1] %vm1310, %v1306
  // Predicated region
  $region10: #{forward.1} parent=0 // pred_check
    _
  $region11: #{forward.1} parent=0 // pred_check_branch
    %1313 = sbr.rel (0) target = $region13
  $region12: #{forward.1} parent=0 // pred_region
    _
  $region13: #{forward.1} parent=0 // pred_fallthru
    _
  // Predicated region
  $region14: #{forward.1} parent=0 // pred_check
    _
  $region15: #{forward.1} parent=0 // pred_check_branch
    %1315 = sbr.rel (0) target = $region17
  $region16: #{forward.1} parent=0 // pred_region
    _
  $region17: #{forward.1} parent=0 // pred_fallthru
    _

</llo_original>
